<compile_context>
chip_gen: v7x
topology: tpu7x:2x2x1
jax: 0.10.0
libtpu: 0.0.40
codegen_flags: <defaults>
</compile_context>

<pallas_src>
import functools
import math

import jax
import jax.numpy as jnp
from jax.experimental import pallas as pl
from jax.experimental.pallas import tpu as pltpu


INPUT_DIM = 128
HIDDEN_DIM = int(INPUT_DIM * 0.5)   # 64  (logical, as in the torch module)
OUTPUT_DIM = 10                     # logical

LANE = 128
SUBLANE = 8
HIDDEN_PAD = 128                    # hidden dim padded to full lane width
OUT_PAD = 128                       # output dim padded to full lane width
TILE_B_MAX = 256                    # batch tile (multiple of 8, VMEM-safe on v7x)


def _round_up(x, m):
    return ((x + m - 1) // m) * m


def _dam_fused_kernel(x_ref, proj_ref, w1_ref, b1_ref, w2_ref, b2_ref,
                      out_ref, *, hw_scale, channels):
    """Fused: GAP(x) @ proj -> sigmoid(. @ W1 + b1) -> sigmoid(. @ W2 + b2)."""
    x = x_ref[...]                                            # [TB, C, H, W] f32

    # Global average pool over H, W (two lane reductions + scale).
    pooled = jnp.sum(jnp.sum(x, axis=3), axis=2) * hw_scale   # [TB, C] f32

    # Tiny-K projection (C == 3): do it on the VPU with broadcasts instead of
    # a masked K=3 MXU matmul.
    proj = proj_ref[...]                                      # [C, 128] f32
    feats = pooled[:, 0:1] * proj[0:1, :]                     # [TB, 128]
    for c in range(1, channels):                              # static loop
        feats = feats + pooled[:, c:c + 1] * proj[c:c + 1, :]

    # Layer 1: bf16 MXU matmul, f32 accumulate, f32 bias/sigmoid.
    h = jnp.dot(feats.astype(jnp.bfloat16), w1_ref[...],
                preferred_element_type=jnp.float32)           # [TB, 128]
    h = jax.nn.sigmoid(h + b1_ref[...])

    # Layer 2 (padded W2 rows are zero, so sigmoid(0)=0.5 pad lanes are inert).
    o = jnp.dot(h.astype(jnp.bfloat16), w2_ref[...],
                preferred_element_type=jnp.float32)           # [TB, 128]
    out_ref[...] = jax.nn.sigmoid(o + b2_ref[...])            # lane-dense store


def dam_debug_forward(x, kernel_params):
    """Full DAMDebug forward (backbone stub + head) as one Pallas kernel.

    x             : [B, C, H, W] f32
    kernel_params : (proj [C,128] f32, w1 [128,128] bf16 (cols 64: zero),
                     b1 [1,128] f32 (cols 64: zero),
                     w2 [128,128] bf16 (rows 64: zero, cols 10: zero),
                     b2 [1,128] f32 (cols 10: zero))
    returns [B, OUTPUT_DIM] f32
    """
    proj, w1p, b1p, w2p, b2p = kernel_params
    B, C, H, W = x.shape

    # Round batch up to a sublane multiple; cap the tile so VMEM stays bounded
    # (x tile padded layout: tile_b * C * 16 * 128 * 4 B -> ~6 MiB at 256).
    tile_b = min(TILE_B_MAX, _round_up(B, SUBLANE))
    b_pad = _round_up(B, tile_b)
    if b_pad != B:
        x = jnp.pad(x, ((0, b_pad - B), (0, 0), (0, 0), (0, 0)))

    kernel = functools.partial(_dam_fused_kernel,
                               hw_scale=1.0 / float(H * W),
                               channels=C)

    out = pl.pallas_call(
        kernel,
        out_shape=jax.ShapeDtypeStruct((b_pad, OUT_PAD), jnp.float32),
        grid_spec=pltpu.PrefetchScalarGridSpec(
            num_scalar_prefetch=0,
            grid=(b_pad // tile_b,),
            in_specs=[
                pl.BlockSpec((tile_b, C, H, W), lambda i: (i, 0, 0, 0)),
                pl.BlockSpec((C, INPUT_DIM), lambda i: (0, 0)),      # resident
                pl.BlockSpec((INPUT_DIM, HIDDEN_PAD), lambda i: (0, 0)),
                pl.BlockSpec((1, HIDDEN_PAD), lambda i: (0, 0)),
                pl.BlockSpec((HIDDEN_PAD, OUT_PAD), lambda i: (0, 0)),
                pl.BlockSpec((1, OUT_PAD), lambda i: (0, 0)),
            ],
            out_specs=pl.BlockSpec((tile_b, OUT_PAD), lambda i: (i, 0)),
        ),
        compiler_params=pltpu.CompilerParams(
            dimension_semantics=("parallel",),          # megacore on v7x
            vmem_limit_bytes=32 * 1024 * 1024,          # safe on v5e/v6e/v7x
        ),
    )(x, proj, w1p, b1p, w2p, b2p)

    # Drop batch padding and the zero-padded output lanes.
    return out[:B, :OUTPUT_DIM]


def init_params(key, channels=3):
    """Deterministic init (torch-Linear-style uniform) + padded kernel copies."""
    k_proj, k_w1, k_b1, k_w2, k_b2 = jax.random.split(key, 5)

    proj = jax.random.normal(k_proj, (channels, INPUT_DIM), jnp.float32) * 0.1

    lim1 = 1.0 / math.sqrt(INPUT_DIM)
    w1 = jax.random.uniform(k_w1, (INPUT_DIM, HIDDEN_DIM), jnp.float32, -lim1, lim1)
    b1 = jax.random.uniform(k_b1, (HIDDEN_DIM,), jnp.float32, -lim1, lim1)

    lim2 = 1.0 / math.sqrt(HIDDEN_DIM)
    w2 = jax.random.uniform(k_w2, (HIDDEN_DIM, OUTPUT_DIM), jnp.float32, -lim2, lim2)
    b2 = jax.random.uniform(k_b2, (OUTPUT_DIM,), jnp.float32, -lim2, lim2)

    # Zero-padded, lane-dense kernel copies (matmul weights cast to bf16).
    w1p = jnp.zeros((INPUT_DIM, HIDDEN_PAD), jnp.float32)
    w1p = w1p.at[:, :HIDDEN_DIM].set(w1).astype(jnp.bfloat16)
    b1p = jnp.zeros((1, HIDDEN_PAD), jnp.float32).at[0, :HIDDEN_DIM].set(b1)
    w2p = jnp.zeros((HIDDEN_PAD, OUT_PAD), jnp.float32)
    w2p = w2p.at[:HIDDEN_DIM, :OUTPUT_DIM].set(w2).astype(jnp.bfloat16)
    b2p = jnp.zeros((1, OUT_PAD), jnp.float32).at[0, :OUTPUT_DIM].set(b2)

    kernel_params = (proj, w1p, b1p, w2p, b2p)
    ref_params = (proj, w1, b1, w2, b2)
    return kernel_params, ref_params


def reference_forward(x, ref_params):
    """Pure-JAX f32 reference for the fused forward."""
    proj, w1, b1, w2, b2 = ref_params
    pooled = jnp.mean(x, axis=(2, 3))          # GAP -> [B, C]
    feats = pooled @ proj                      # [B, INPUT_DIM]
    h = jax.nn.sigmoid(feats @ w1 + b1)
    return jax.nn.sigmoid(h @ w2 + b2)


if __name__ == "__main__":
    key = jax.random.PRNGKey(0)
    k_x, k_p = jax.random.split(key)

    # Small NCHW image batch, consistent with a ResNet-style backbone input.
    x = jax.random.normal(k_x, (2, 3, 16, 16), jnp.float32)
    kernel_params, ref_params = init_params(k_p, channels=3)

    out = dam_debug_forward(x, kernel_params)
    out = jax.block_until_ready(out)

    ref = reference_forward(x, ref_params)
    assert out.shape == (2, OUTPUT_DIM)
    # bf16 matmul inputs => allow a small tolerance vs. the f32 reference.
    assert jnp.allclose(out, ref, atol=1e-2, rtol=1e-2), float(
        jnp.max(jnp.abs(out - ref)))

    print("KERNEL_OK")
</pallas_src>

<mosaic_0001>
module attributes {stable_mosaic.version = 11 : i64} {
  func.func @_dam_fused_kernel(%arg0: i32, %arg1: memref<8x3x16x16xf32, #tpu.memory_space<vmem>>, %arg2: memref<3x128xf32, #tpu.memory_space<vmem>>, %arg3: memref<128x128xbf16, #tpu.memory_space<vmem>>, %arg4: memref<1x128xf32, #tpu.memory_space<vmem>>, %arg5: memref<128x128xbf16, #tpu.memory_space<vmem>>, %arg6: memref<1x128xf32, #tpu.memory_space<vmem>>, %arg7: memref<8x128xf32, #tpu.memory_space<vmem>>) attributes {dimension_semantics = [#tpu.dimension_semantics<parallel>], iteration_bounds = array<i64: 1>, scalar_prefetch = 0 : i64, scratch_operands = 0 : i64, tpu.core_type = #tpu.core_type<tc>, window_params = [{transform_indices = @transform_0, window_bounds = array<i64: 8, 3, 16, 16>}, {pipeline_mode = #tpu.pipeline_mode<synchronous>, transform_indices = @transform_1, window_bounds = array<i64: 3, 128>}, {pipeline_mode = #tpu.pipeline_mode<synchronous>, transform_indices = @transform_2, window_bounds = array<i64: 128, 128>}, {pipeline_mode = #tpu.pipeline_mode<synchronous>, transform_indices = @transform_3, window_bounds = array<i64: 1, 128>}, {pipeline_mode = #tpu.pipeline_mode<synchronous>, transform_indices = @transform_4, window_bounds = array<i64: 128, 128>}, {pipeline_mode = #tpu.pipeline_mode<synchronous>, transform_indices = @transform_5, window_bounds = array<i64: 1, 128>}, {transform_indices = @transform_6, window_bounds = array<i64: 8, 128>}]} {
    %c0 = arith.constant 0 : index
    %c0_0 = arith.constant 0 : index
    %c0_1 = arith.constant 0 : index
    %c0_2 = arith.constant 0 : index
    %0 = vector.load %arg1[%c0, %c0_0, %c0_1, %c0_2] : memref<8x3x16x16xf32, #tpu.memory_space<vmem>>, vector<8x3x16x16xf32>
    %cst = arith.constant dense<0.000000e+00> : vector<8x3x16xf32>
    %1 = vector.multi_reduction <add>, %0, %cst [3] : vector<8x3x16x16xf32> to vector<8x3x16xf32>
    %cst_3 = arith.constant dense<0.000000e+00> : vector<8x3xf32>
    %2 = vector.multi_reduction <add>, %1, %cst_3 [2] : vector<8x3x16xf32> to vector<8x3xf32>
    %cst_4 = arith.constant 3.906250e-03 : f32
    %3 = vector.broadcast %cst_4 : f32 to vector<8x3xf32>
    %4 = arith.mulf %2, %3 : vector<8x3xf32>
    %c0_5 = arith.constant 0 : index
    %c0_6 = arith.constant 0 : index
    %5 = vector.load %arg2[%c0_5, %c0_6] : memref<3x128xf32, #tpu.memory_space<vmem>>, vector<3x128xf32>
    %6 = vector.extract_strided_slice %4 {offsets = [0, 0], sizes = [8, 1], strides = [1, 1]} : vector<8x3xf32> to vector<8x1xf32>
    %7 = vector.extract_strided_slice %5 {offsets = [0, 0], sizes = [1, 128], strides = [1, 1]} : vector<3x128xf32> to vector<1x128xf32>
    %8 = vector.broadcast %6 : vector<8x1xf32> to vector<8x128xf32>
    %9 = vector.broadcast %7 : vector<1x128xf32> to vector<8x128xf32>
    %10 = arith.mulf %8, %9 : vector<8x128xf32>
    %11 = vector.extract_strided_slice %4 {offsets = [0, 1], sizes = [8, 1], strides = [1, 1]} : vector<8x3xf32> to vector<8x1xf32>
    %12 = vector.extract_strided_slice %5 {offsets = [1, 0], sizes = [1, 128], strides = [1, 1]} : vector<3x128xf32> to vector<1x128xf32>
    %13 = vector.broadcast %11 : vector<8x1xf32> to vector<8x128xf32>
    %14 = vector.broadcast %12 : vector<1x128xf32> to vector<8x128xf32>
    %15 = arith.mulf %13, %14 : vector<8x128xf32>
    %16 = arith.addf %10, %15 : vector<8x128xf32>
    %17 = vector.extract_strided_slice %4 {offsets = [0, 2], sizes = [8, 1], strides = [1, 1]} : vector<8x3xf32> to vector<8x1xf32>
    %18 = vector.extract_strided_slice %5 {offsets = [2, 0], sizes = [1, 128], strides = [1, 1]} : vector<3x128xf32> to vector<1x128xf32>
    %19 = vector.broadcast %17 : vector<8x1xf32> to vector<8x128xf32>
    %20 = vector.broadcast %18 : vector<1x128xf32> to vector<8x128xf32>
    %21 = arith.mulf %19, %20 : vector<8x128xf32>
    %22 = arith.addf %16, %21 : vector<8x128xf32>
    %23 = arith.truncf %22 : vector<8x128xf32> to vector<8x128xbf16>
    %c0_7 = arith.constant 0 : index
    %c0_8 = arith.constant 0 : index
    %24 = vector.load %arg3[%c0_7, %c0_8] : memref<128x128xbf16, #tpu.memory_space<vmem>>, vector<128x128xbf16>
    %cst_9 = arith.constant dense<0.000000e+00> : vector<8x128xf32>
    %25 = tpu.matmul %23, %24, %cst_9 {dimension_numbers = #tpu.dot_dimension_numbers<[1], [0], [0], [1], [0, 0, 1, 1], [], []>} : vector<8x128xbf16>, vector<128x128xbf16>, vector<8x128xf32> -> vector<8x128xf32>
    %c0_10 = arith.constant 0 : index
    %c0_11 = arith.constant 0 : index
    %26 = vector.load %arg4[%c0_10, %c0_11] : memref<1x128xf32, #tpu.memory_space<vmem>>, vector<1x128xf32>
    %27 = vector.broadcast %26 : vector<1x128xf32> to vector<8x128xf32>
    %28 = arith.addf %25, %27 : vector<8x128xf32>
    %29 = arith.negf %28 : vector<8x128xf32>
    %30 = math.exp %29 : vector<8x128xf32>
    %cst_12 = arith.constant 1.000000e+00 : f32
    %31 = vector.broadcast %cst_12 : f32 to vector<8x128xf32>
    %32 = arith.addf %31, %30 : vector<8x128xf32>
    %33 = arith.divf %31, %32 : vector<8x128xf32>
    %34 = arith.truncf %33 : vector<8x128xf32> to vector<8x128xbf16>
    %c0_13 = arith.constant 0 : index
    %c0_14 = arith.constant 0 : index
    %35 = vector.load %arg5[%c0_13, %c0_14] : memref<128x128xbf16, #tpu.memory_space<vmem>>, vector<128x128xbf16>
    %cst_15 = arith.constant dense<0.000000e+00> : vector<8x128xf32>
    %36 = tpu.matmul %34, %35, %cst_15 {dimension_numbers = #tpu.dot_dimension_numbers<[1], [0], [0], [1], [0, 0, 1, 1], [], []>} : vector<8x128xbf16>, vector<128x128xbf16>, vector<8x128xf32> -> vector<8x128xf32>
    %c0_16 = arith.constant 0 : index
    %c0_17 = arith.constant 0 : index
    %37 = vector.load %arg6[%c0_16, %c0_17] : memref<1x128xf32, #tpu.memory_space<vmem>>, vector<1x128xf32>
    %38 = vector.broadcast %37 : vector<1x128xf32> to vector<8x128xf32>
    %39 = arith.addf %36, %38 : vector<8x128xf32>
    %40 = arith.negf %39 : vector<8x128xf32>
    %41 = math.exp %40 : vector<8x128xf32>
    %cst_18 = arith.constant 1.000000e+00 : f32
    %42 = vector.broadcast %cst_18 : f32 to vector<8x128xf32>
    %43 = arith.addf %42, %41 : vector<8x128xf32>
    %44 = arith.divf %42, %43 : vector<8x128xf32>
    %c0_19 = arith.constant 0 : index
    %c0_20 = arith.constant 0 : index
    %45 = vector.load %arg7[%c0_19, %c0_20] : memref<8x128xf32, #tpu.memory_space<vmem>>, vector<8x128xf32>
    tpu.vector_store %arg7[%c0_19, %c0_20], %44 {strides = array<i32>} : memref<8x128xf32, #tpu.memory_space<vmem>>, vector<8x128xf32>,
    return
  }
  func.func @transform_0(%arg0: i32) -> (i32, i32, i32, i32) {
    %c0_i32 = arith.constant 0 : i32
    %c0_i32_0 = arith.constant 0 : i32
    %c0_i32_1 = arith.constant 0 : i32
    %c0_i32_2 = arith.constant 0 : i32
    return %arg0, %c0_i32, %c0_i32_0, %c0_i32_1 : i32, i32, i32, i32
  }
  func.func @transform_1(%arg0: i32) -> (i32, i32) {
    %c0_i32 = arith.constant 0 : i32
    %c0_i32_0 = arith.constant 0 : i32
    %c0_i32_1 = arith.constant 0 : i32
    return %c0_i32, %c0_i32_0 : i32, i32
  }
  func.func @transform_2(%arg0: i32) -> (i32, i32) {
    %c0_i32 = arith.constant 0 : i32
    %c0_i32_0 = arith.constant 0 : i32
    %c0_i32_1 = arith.constant 0 : i32
    return %c0_i32, %c0_i32_0 : i32, i32
  }
  func.func @transform_3(%arg0: i32) -> (i32, i32) {
    %c0_i32 = arith.constant 0 : i32
    %c0_i32_0 = arith.constant 0 : i32
    %c0_i32_1 = arith.constant 0 : i32
    return %c0_i32, %c0_i32_0 : i32, i32
  }
  func.func @transform_4(%arg0: i32) -> (i32, i32) {
    %c0_i32 = arith.constant 0 : i32
    %c0_i32_0 = arith.constant 0 : i32
    %c0_i32_1 = arith.constant 0 : i32
    return %c0_i32, %c0_i32_0 : i32, i32
  }
  func.func @transform_5(%arg0: i32) -> (i32, i32) {
    %c0_i32 = arith.constant 0 : i32
    %c0_i32_0 = arith.constant 0 : i32
    %c0_i32_1 = arith.constant 0 : i32
    return %c0_i32, %c0_i32_0 : i32, i32
  }
  func.func @transform_6(%arg0: i32) -> (i32, i32) {
    %c0_i32 = arith.constant 0 : i32
    %c0_i32_0 = arith.constant 0 : i32
    return %arg0, %c0_i32 : i32, i32
  }
}

</mosaic_0001>

<llo_original>
// kernel: tpu_custom_call.1
$region0: #{tpu_custom_call.1}
  #allocation0 [shape = 'u32[]', space=smem, size = 0x4, offset = 0x4, fixed_abs, tag = 'smem constant byte address 0x4 - core index']
  #allocation1 [shape = 'u32[144,128]{1,0:T(1,128)}', space=vmem, size = 0x12000, scoped, tag = 'internal scratch']
  %s0 = inlined_call_operand.hbm [shape: f32[8,3,16,16], index: 0, kind: input, shape index: {}]
  %s1 = inlined_call_operand.hbm [shape: f32[3,128], index: 1, kind: input, shape index: {}]
  %s2 = inlined_call_operand.hbm [shape: bf16[128,128], index: 2, kind: input, shape index: {}]
  %s3 = inlined_call_operand.vmem [shape: f32[1,128], index: 3, kind: input, shape index: {}]
  %s4 = inlined_call_operand.hbm [shape: bf16[128,128], index: 4, kind: input, shape index: {}]
  %s5 = inlined_call_operand.vmem [shape: f32[1,128], index: 5, kind: input, shape index: {}]
  %s6 = inlined_call_operand.hbm [shape: f32[8,128], index: 6, kind: output, shape index: {}]
  %s7 = sld [smem:[#allocation0]]
  $region50: #{tpu_custom_call.1} parent=0
    _
  %s9 = ssub.s32 1, %s7
  %s10 = scalar_select 0, %s9, %s7
  $region1: #{tpu_custom_call.1} parent=0
    #allocation2 [shape = 'u8[196608]{0}', space=vmem, size = 0x30000, scoped, tag = 'input window, operand 0, single buffered']
    #allocation3 [shape = 's32[1]{0}', space=sflag, size = 0x4, scoped, tag = 'scoped memory for tpu_custom_call.1']
    #allocation4 [shape = 's32[1]{0}', space=sflag, size = 0x4, scoped, tag = 'scoped memory for tpu_custom_call.1']
    #allocation5 [shape = 'u8[2048]{0}', space=vmem, size = 0x800, scoped, tag = 'input window, operand 1, single buffered']
    #allocation6 [shape = 's32[1]{0}', space=sflag, size = 0x4, scoped, tag = 'scoped memory for tpu_custom_call.1']
    #allocation7 [shape = 'u8[32768]{0}', space=vmem, size = 0x8000, scoped, tag = 'input window, operand 2, single buffered']
    #allocation8 [shape = 'u8[32768]{0}', space=vmem, size = 0x8000, scoped, tag = 'input window, operand 4, single buffered']
    #allocation9 [shape = 's32[1]{0}', space=sflag, size = 0x4, scoped, tag = 'scoped memory for tpu_custom_call.1']
    #allocation10 [shape = 'u8[4096]{0}', space=vmem, size = 0x1000, scoped, tag = 'output window, operand 0, single buffered']
    %11 = vsyncpa [#allocation3], 0
    %12 = vsyncpa [#allocation6], 0
    %13 = vsyncpa [#allocation9], 0
    %14 = vsyncpa [#allocation4], 0
    // Predicated region
    $region2: #{tpu_custom_call.1} parent=1 // pred_check
      _
    $region3: #{tpu_custom_call.1} parent=1 // pred_check_branch
      %16 = sbr.rel (0) target = $region5
    $region4: #{tpu_custom_call.1} parent=1 // pred_region
      %s18 = ssub.s32 6144, 6144
      %19 = vsyncadd [#allocation3], %s18
      %s20 = sshll.u32 [#allocation2], 4
      %s21 = int_to_ptr.vmem [resolvable:$true] %s20
      %26 = dma.hbm_to_vmem [thread:$0]  %s0, 6144, %s21, [#allocation3], 128, 128, 8
    $region5: #{tpu_custom_call.1} parent=1 // pred_fallthru
      _
    // Predicated region
    $region6: #{tpu_custom_call.1} parent=1 // pred_check
      _
    $region7: #{tpu_custom_call.1} parent=1 // pred_check_branch
      %28 = sbr.rel (0) target = $region9
    $region8: #{tpu_custom_call.1} parent=1 // pred_region
      %s30 = ssub.s32 64, 64
      %31 = vsyncadd [#allocation6], %s30
      %s33 = sshll.u32 [#allocation5], 4
      %s34 = int_to_ptr.vmem [resolvable:$true] %s33
      %36 = dma.hbm_to_vmem [thread:$0]  %s1, 64, %s34, [#allocation6]
    $region9: #{tpu_custom_call.1} parent=1 // pred_fallthru
      _
    // Predicated region
    $region10: #{tpu_custom_call.1} parent=1 // pred_check
      _
    $region11: #{tpu_custom_call.1} parent=1 // pred_check_branch
      %38 = sbr.rel (0) target = $region13
    $region12: #{tpu_custom_call.1} parent=1 // pred_region
      %s40 = ssub.s32 1024, 1024
      %41 = vsyncadd [#allocation6], %s40
      %s42 = sshll.u32 [#allocation7], 4
      %s43 = int_to_ptr.vmem [resolvable:$true] %s42
      %48 = dma.hbm_to_vmem [thread:$0]  %s2, 1024, %s43, [#allocation6], 64, 64, 4
    $region13: #{tpu_custom_call.1} parent=1 // pred_fallthru
      _
    // Predicated region
    $region14: #{tpu_custom_call.1} parent=1 // pred_check
      _
    $region15: #{tpu_custom_call.1} parent=1 // pred_check_branch
      %50 = sbr.rel (0) target = $region17
    $region16: #{tpu_custom_call.1} parent=1 // pred_region
      _
    $region17: #{tpu_custom_call.1} parent=1 // pred_fallthru
      _
    // Predicated region
    $region18: #{tpu_custom_call.1} parent=1 // pred_check
      _
    $region19: #{tpu_custom_call.1} parent=1 // pred_check_branch
      %52 = sbr.rel (0) target = $region21
    $region20: #{tpu_custom_call.1} parent=1 // pred_region
      %s54 = ssub.s32 1024, 1024
      %55 = vsyncadd [#allocation9], %s54
      %s56 = sshll.u32 [#allocation8], 4
      %s57 = int_to_ptr.vmem [resolvable:$true] %s56
      %62 = dma.hbm_to_vmem [thread:$0]  %s4, 1024, %s57, [#allocation9], 64, 64, 4
    $region21: #{tpu_custom_call.1} parent=1 // pred_fallthru
      _
    // Predicated region
    $region22: #{tpu_custom_call.1} parent=1 // pred_check
      _
    $region23: #{tpu_custom_call.1} parent=1 // pred_check_branch
      %64 = sbr.rel (0) target = $region25
    $region24: #{tpu_custom_call.1} parent=1 // pred_region
      _
    $region25: #{tpu_custom_call.1} parent=1 // pred_fallthru
      _
    // Predicated region
    $region26: #{tpu_custom_call.1} parent=1 // pred_check
      _
    $region27: #{tpu_custom_call.1} parent=1 // pred_check_branch
      %66 = sbr.rel (0) target = $region29
    $region28: #{tpu_custom_call.1} parent=1 // pred_region
      %67 = dma.done [#allocation3], 6144
    $region29: #{tpu_custom_call.1} parent=1 // pred_fallthru
      _
    // Predicated region
    $region30: #{tpu_custom_call.1} parent=1 // pred_check
      _
    $region31: #{tpu_custom_call.1} parent=1 // pred_check_branch
      %69 = sbr.rel (0) target = $region33
    $region32: #{tpu_custom_call.1} parent=1 // pred_region
      %70 = dma.done [#allocation6], 64
    $region33: #{tpu_custom_call.1} parent=1 // pred_fallthru
      _
    // Predicated region
    $region34: #{tpu_custom_call.1} parent=1 // pred_check
      _
    $region35: #{tpu_custom_call.1} parent=1 // pred_check_branch
      %72 = sbr.rel (0) target = $region37
    $region36: #{tpu_custom_call.1} parent=1 // pred_region
      %73 = dma.done [#allocation6], 1024
    $region37: #{tpu_custom_call.1} parent=1 // pred_fallthru
      _
    // Predicated region
    $region38: #{tpu_custom_call.1} parent=1 // pred_check
      _
    $region39: #{tpu_custom_call.1} parent=1 // pred_check_branch
      %75 = sbr.rel (0) target = $region41
    $region40: #{tpu_custom_call.1} parent=1 // pred_region
      %76 = dma.done [#allocation9], 1024
    $region41: #{tpu_custom_call.1} parent=1 // pred_fallthru
      _
    %v78 = vld [vmem:[#allocation2] sm:$0xff]
    %v79 = vld [vmem:[#allocation2 + $0x8] sm:$0xff]
    %v80 = vld [vmem:[#allocation2 + $0x10] sm:$0xff]
    %v81 = vld [vmem:[#allocation2 + $0x18] sm:$0xff]
    %v82 = vld [vmem:[#allocation2 + $0x20] sm:$0xff]
    %v83 = vld [vmem:[#allocation2 + $0x28] sm:$0xff]
    %v84 = vld [vmem:[#allocation2 + $0x30] sm:$0xff]
    %v85 = vld [vmem:[#allocation2 + $0x38] sm:$0xff]
    %v86 = vld [vmem:[#allocation2 + $0x40] sm:$0xff]
    %v87 = vld [vmem:[#allocation2 + $0x48] sm:$0xff]
    %v88 = vld [vmem:[#allocation2 + $0x50] sm:$0xff]
    %v89 = vld [vmem:[#allocation2 + $0x58] sm:$0xff]
    %v90 = vld [vmem:[#allocation2 + $0x60] sm:$0xff]
    %v91 = vld [vmem:[#allocation2 + $0x68] sm:$0xff]
    %v92 = vld [vmem:[#allocation2 + $0x70] sm:$0xff]
    %v93 = vld [vmem:[#allocation2 + $0x78] sm:$0xff]
    %v94 = vld [vmem:[#allocation2 + $0x80] sm:$0xff]
    %v95 = vld [vmem:[#allocation2 + $0x88] sm:$0xff]
    %v96 = vld [vmem:[#allocation2 + $0x90] sm:$0xff]
    %v97 = vld [vmem:[#allocation2 + $0x98] sm:$0xff]
    %v98 = vld [vmem:[#allocation2 + $0xa0] sm:$0xff]
    %v99 = vld [vmem:[#allocation2 + $0xa8] sm:$0xff]
    %v100 = vld [vmem:[#allocation2 + $0xb0] sm:$0xff]
    %v101 = vld [vmem:[#allocation2 + $0xb8] sm:$0xff]
    %v102 = vld [vmem:[#allocation2 + $0xc0] sm:$0xff]
    %v103 = vld [vmem:[#allocation2 + $0xc8] sm:$0xff]
    %v104 = vld [vmem:[#allocation2 + $0xd0] sm:$0xff]
    %v105 = vld [vmem:[#allocation2 + $0xd8] sm:$0xff]
    %v106 = vld [vmem:[#allocation2 + $0xe0] sm:$0xff]
    %v107 = vld [vmem:[#allocation2 + $0xe8] sm:$0xff]
    %v108 = vld [vmem:[#allocation2 + $0xf0] sm:$0xff]
    %v109 = vld [vmem:[#allocation2 + $0xf8] sm:$0xff]
    %v110 = vld [vmem:[#allocation2 + $0x100] sm:$0xff]
    %v111 = vld [vmem:[#allocation2 + $0x108] sm:$0xff]
    %v112 = vld [vmem:[#allocation2 + $0x110] sm:$0xff]
    %v113 = vld [vmem:[#allocation2 + $0x118] sm:$0xff]
    %v114 = vld [vmem:[#allocation2 + $0x120] sm:$0xff]
    %v115 = vld [vmem:[#allocation2 + $0x128] sm:$0xff]
    %v116 = vld [vmem:[#allocation2 + $0x130] sm:$0xff]
    %v117 = vld [vmem:[#allocation2 + $0x138] sm:$0xff]
    %v118 = vld [vmem:[#allocation2 + $0x140] sm:$0xff]
    %v119 = vld [vmem:[#allocation2 + $0x148] sm:$0xff]
    %v120 = vld [vmem:[#allocation2 + $0x150] sm:$0xff]
    %v121 = vld [vmem:[#allocation2 + $0x158] sm:$0xff]
    %v122 = vld [vmem:[#allocation2 + $0x160] sm:$0xff]
    %v123 = vld [vmem:[#allocation2 + $0x168] sm:$0xff]
    %v124 = vld [vmem:[#allocation2 + $0x170] sm:$0xff]
    %v125 = vld [vmem:[#allocation2 + $0x178] sm:$0xff]
    %vm126 = vcmask 130048
    %v127 = vsel %vm126, %v78, 0.0
    %128 = vadd.xlane.f32.xlu0 %v127
    %v129 = vpop.xlane.xlu0 %128
    %v130 = vsel %vm126, %v79, 0.0
    %131 = vadd.xlane.f32.xlu0 %v130
    %v132 = vpop.xlane.xlu0 %131
    %v133 = vsel %vm126, %v80, 0.0
    %134 = vadd.xlane.f32.xlu0 %v133
    %v135 = vpop.xlane.xlu0 %134
    %v136 = vsel %vm126, %v81, 0.0
    %137 = vadd.xlane.f32.xlu0 %v136
    %v138 = vpop.xlane.xlu0 %137
    %v139 = vsel %vm126, %v82, 0.0
    %140 = vadd.xlane.f32.xlu0 %v139
    %v141 = vpop.xlane.xlu0 %140
    %v142 = vsel %vm126, %v83, 0.0
    %143 = vadd.xlane.f32.xlu0 %v142
    %v144 = vpop.xlane.xlu0 %143
    %v145 = vsel %vm126, %v84, 0.0
    %146 = vadd.xlane.f32.xlu0 %v145
    %v147 = vpop.xlane.xlu0 %146
    %v148 = vsel %vm126, %v85, 0.0
    %149 = vadd.xlane.f32.xlu0 %v148
    %v150 = vpop.xlane.xlu0 %149
    %v151 = vsel %vm126, %v86, 0.0
    %152 = vadd.xlane.f32.xlu0 %v151
    %v153 = vpop.xlane.xlu0 %152
    %v154 = vsel %vm126, %v87, 0.0
    %155 = vadd.xlane.f32.xlu0 %v154
    %v156 = vpop.xlane.xlu0 %155
    %v157 = vsel %vm126, %v88, 0.0
    %158 = vadd.xlane.f32.xlu0 %v157
    %v159 = vpop.xlane.xlu0 %158
    %v160 = vsel %vm126, %v89, 0.0
    %161 = vadd.xlane.f32.xlu0 %v160
    %v162 = vpop.xlane.xlu0 %161
    %v163 = vsel %vm126, %v90, 0.0
    %164 = vadd.xlane.f32.xlu0 %v163
    %v165 = vpop.xlane.xlu0 %164
    %v166 = vsel %vm126, %v91, 0.0
    %167 = vadd.xlane.f32.xlu0 %v166
    %v168 = vpop.xlane.xlu0 %167
    %v169 = vsel %vm126, %v92, 0.0
    %170 = vadd.xlane.f32.xlu0 %v169
    %v171 = vpop.xlane.xlu0 %170
    %v172 = vsel %vm126, %v93, 0.0
    %173 = vadd.xlane.f32.xlu0 %v172
    %v174 = vpop.xlane.xlu0 %173
    %v175 = vsel %vm126, %v94, 0.0
    %176 = vadd.xlane.f32.xlu0 %v175
    %v177 = vpop.xlane.xlu0 %176
    %v178 = vsel %vm126, %v95, 0.0
    %179 = vadd.xlane.f32.xlu0 %v178
    %v180 = vpop.xlane.xlu0 %179
    %v181 = vsel %vm126, %v96, 0.0
    %182 = vadd.xlane.f32.xlu0 %v181
    %v183 = vpop.xlane.xlu0 %182
    %v184 = vsel %vm126, %v97, 0.0
    %185 = vadd.xlane.f32.xlu0 %v184
    %v186 = vpop.xlane.xlu0 %185
    %v187 = vsel %vm126, %v98, 0.0
    %188 = vadd.xlane.f32.xlu0 %v187
    %v189 = vpop.xlane.xlu0 %188
    %v190 = vsel %vm126, %v99, 0.0
    %191 = vadd.xlane.f32.xlu0 %v190
    %v192 = vpop.xlane.xlu0 %191
    %v193 = vsel %vm126, %v100, 0.0
    %194 = vadd.xlane.f32.xlu0 %v193
    %v195 = vpop.xlane.xlu0 %194
    %v196 = vsel %vm126, %v101, 0.0
    %197 = vadd.xlane.f32.xlu0 %v196
    %v198 = vpop.xlane.xlu0 %197
    %v199 = vsel %vm126, %v102, 0.0
    %200 = vadd.xlane.f32.xlu0 %v199
    %v201 = vpop.xlane.xlu0 %200
    %v202 = vsel %vm126, %v103, 0.0
    %203 = vadd.xlane.f32.xlu0 %v202
    %v204 = vpop.xlane.xlu0 %203
    %v205 = vsel %vm126, %v104, 0.0
    %206 = vadd.xlane.f32.xlu0 %v205
    %v207 = vpop.xlane.xlu0 %206
    %v208 = vsel %vm126, %v105, 0.0
    %209 = vadd.xlane.f32.xlu0 %v208
    %v210 = vpop.xlane.xlu0 %209
    %v211 = vsel %vm126, %v106, 0.0
    %212 = vadd.xlane.f32.xlu0 %v211
    %v213 = vpop.xlane.xlu0 %212
    %v214 = vsel %vm126, %v107, 0.0
    %215 = vadd.xlane.f32.xlu0 %v214
    %v216 = vpop.xlane.xlu0 %215
    %v217 = vsel %vm126, %v108, 0.0
    %218 = vadd.xlane.f32.xlu0 %v217
    %v219 = vpop.xlane.xlu0 %218
    %v220 = vsel %vm126, %v109, 0.0
    %221 = vadd.xlane.f32.xlu0 %v220
    %v222 = vpop.xlane.xlu0 %221
    %v223 = vsel %vm126, %v110, 0.0
    %224 = vadd.xlane.f32.xlu0 %v223
    %v225 = vpop.xlane.xlu0 %224
    %v226 = vsel %vm126, %v111, 0.0
    %227 = vadd.xlane.f32.xlu0 %v226
    %v228 = vpop.xlane.xlu0 %227
    %v229 = vsel %vm126, %v112, 0.0
    %230 = vadd.xlane.f32.xlu0 %v229
    %v231 = vpop.xlane.xlu0 %230
    %v232 = vsel %vm126, %v113, 0.0
    %233 = vadd.xlane.f32.xlu0 %v232
    %v234 = vpop.xlane.xlu0 %233
    %v235 = vsel %vm126, %v114, 0.0
    %236 = vadd.xlane.f32.xlu0 %v235
    %v237 = vpop.xlane.xlu0 %236
    %v238 = vsel %vm126, %v115, 0.0
    %239 = vadd.xlane.f32.xlu0 %v238
    %v240 = vpop.xlane.xlu0 %239
    %v241 = vsel %vm126, %v116, 0.0
    %242 = vadd.xlane.f32.xlu0 %v241
    %v243 = vpop.xlane.xlu0 %242
    %v244 = vsel %vm126, %v117, 0.0
    %245 = vadd.xlane.f32.xlu0 %v244
    %v246 = vpop.xlane.xlu0 %245
    %v247 = vsel %vm126, %v118, 0.0
    %248 = vadd.xlane.f32.xlu0 %v247
    %v249 = vpop.xlane.xlu0 %248
    %v250 = vsel %vm126, %v119, 0.0
    %251 = vadd.xlane.f32.xlu0 %v250
    %v252 = vpop.xlane.xlu0 %251
    %v253 = vsel %vm126, %v120, 0.0
    %254 = vadd.xlane.f32.xlu0 %v253
    %v255 = vpop.xlane.xlu0 %254
    %v256 = vsel %vm126, %v121, 0.0
    %257 = vadd.xlane.f32.xlu0 %v256
    %v258 = vpop.xlane.xlu0 %257
    %v259 = vsel %vm126, %v122, 0.0
    %260 = vadd.xlane.f32.xlu0 %v259
    %v261 = vpop.xlane.xlu0 %260
    %v262 = vsel %vm126, %v123, 0.0
    %263 = vadd.xlane.f32.xlu0 %v262
    %v264 = vpop.xlane.xlu0 %263
    %v265 = vsel %vm126, %v124, 0.0
    %266 = vadd.xlane.f32.xlu0 %v265
    %v267 = vpop.xlane.xlu0 %266
    %v268 = vsel %vm126, %v125, 0.0
    %269 = vadd.xlane.f32.xlu0 %v268
    %v270 = vpop.xlane.xlu0 %269
    %v319 = vlaneseq
    %v320 = vand.u32 %v319, 127
    %v321 = vlaneseq
    %v322 = vshrl.u32 %v321, 7
    %v323 = vsub.s32 %v320, %v322
    %v324 = vrot.slane %v129, %v323
    %v325 = vadd.s32 %v320, 4294967288
    %v326 = vlaneseq
    %v327 = vshrl.u32 %v326, 7
    %v328 = vsub.s32 %v325, %v327
    %v329 = vrot.slane %v132, %v328
    %vm330 = vcmask 130112
    %v331 = vsel %vm330, %v329, %v324
    %v332 = vlaneseq
    %v333 = vshrl.u32 %v332, 7
    %v334 = vsub.s32 %v320, %v333
    %v335 = vrot.slane %v135, %v334
    %v336 = vlaneseq
    %v337 = vshrl.u32 %v336, 7
    %v338 = vsub.s32 %v325, %v337
    %v339 = vrot.slane %v138, %v338
    %v340 = vsel %vm330, %v339, %v335
    %v341 = vlaneseq
    %v342 = vshrl.u32 %v341, 7
    %v343 = vsub.s32 %v320, %v342
    %v344 = vrot.slane %v141, %v343
    %v345 = vlaneseq
    %v346 = vshrl.u32 %v345, 7
    %v347 = vsub.s32 %v325, %v346
    %v348 = vrot.slane %v144, %v347
    %v349 = vsel %vm330, %v348, %v344
    %v350 = vlaneseq
    %v351 = vshrl.u32 %v350, 7
    %v352 = vsub.s32 %v320, %v351
    %v353 = vrot.slane %v147, %v352
    %v354 = vlaneseq
    %v355 = vshrl.u32 %v354, 7
    %v356 = vsub.s32 %v325, %v355
    %v357 = vrot.slane %v150, %v356
    %v358 = vsel %vm330, %v357, %v353
    %v359 = vlaneseq
    %v360 = vshrl.u32 %v359, 7
    %v361 = vsub.s32 %v320, %v360
    %v362 = vrot.slane %v153, %v361
    %v363 = vlaneseq
    %v364 = vshrl.u32 %v363, 7
    %v365 = vsub.s32 %v325, %v364
    %v366 = vrot.slane %v156, %v365
    %v367 = vsel %vm330, %v366, %v362
    %v368 = vlaneseq
    %v369 = vshrl.u32 %v368, 7
    %v370 = vsub.s32 %v320, %v369
    %v371 = vrot.slane %v159, %v370
    %v372 = vlaneseq
    %v373 = vshrl.u32 %v372, 7
    %v374 = vsub.s32 %v325, %v373
    %v375 = vrot.slane %v162, %v374
    %v376 = vsel %vm330, %v375, %v371
    %v377 = vlaneseq
    %v378 = vshrl.u32 %v377, 7
    %v379 = vsub.s32 %v320, %v378
    %v380 = vrot.slane %v165, %v379
    %v381 = vlaneseq
    %v382 = vshrl.u32 %v381, 7
    %v383 = vsub.s32 %v325, %v382
    %v384 = vrot.slane %v168, %v383
    %v385 = vsel %vm330, %v384, %v380
    %v386 = vlaneseq
    %v387 = vshrl.u32 %v386, 7
    %v388 = vsub.s32 %v320, %v387
    %v389 = vrot.slane %v171, %v388
    %v390 = vlaneseq
    %v391 = vshrl.u32 %v390, 7
    %v392 = vsub.s32 %v325, %v391
    %v393 = vrot.slane %v174, %v392
    %v394 = vsel %vm330, %v393, %v389
    %v395 = vlaneseq
    %v396 = vshrl.u32 %v395, 7
    %v397 = vsub.s32 %v320, %v396
    %v398 = vrot.slane %v177, %v397
    %v399 = vlaneseq
    %v400 = vshrl.u32 %v399, 7
    %v401 = vsub.s32 %v325, %v400
    %v402 = vrot.slane %v180, %v401
    %v403 = vsel %vm330, %v402, %v398
    %v404 = vlaneseq
    %v405 = vshrl.u32 %v404, 7
    %v406 = vsub.s32 %v320, %v405
    %v407 = vrot.slane %v183, %v406
    %v408 = vlaneseq
    %v409 = vshrl.u32 %v408, 7
    %v410 = vsub.s32 %v325, %v409
    %v411 = vrot.slane %v186, %v410
    %v412 = vsel %vm330, %v411, %v407
    %v413 = vlaneseq
    %v414 = vshrl.u32 %v413, 7
    %v415 = vsub.s32 %v320, %v414
    %v416 = vrot.slane %v189, %v415
    %v417 = vlaneseq
    %v418 = vshrl.u32 %v417, 7
    %v419 = vsub.s32 %v325, %v418
    %v420 = vrot.slane %v192, %v419
    %v421 = vsel %vm330, %v420, %v416
    %v422 = vlaneseq
    %v423 = vshrl.u32 %v422, 7
    %v424 = vsub.s32 %v320, %v423
    %v425 = vrot.slane %v195, %v424
    %v426 = vlaneseq
    %v427 = vshrl.u32 %v426, 7
    %v428 = vsub.s32 %v325, %v427
    %v429 = vrot.slane %v198, %v428
    %v430 = vsel %vm330, %v429, %v425
    %v431 = vlaneseq
    %v432 = vshrl.u32 %v431, 7
    %v433 = vsub.s32 %v320, %v432
    %v434 = vrot.slane %v201, %v433
    %v435 = vlaneseq
    %v436 = vshrl.u32 %v435, 7
    %v437 = vsub.s32 %v325, %v436
    %v438 = vrot.slane %v204, %v437
    %v439 = vsel %vm330, %v438, %v434
    %v440 = vlaneseq
    %v441 = vshrl.u32 %v440, 7
    %v442 = vsub.s32 %v320, %v441
    %v443 = vrot.slane %v207, %v442
    %v444 = vlaneseq
    %v445 = vshrl.u32 %v444, 7
    %v446 = vsub.s32 %v325, %v445
    %v447 = vrot.slane %v210, %v446
    %v448 = vsel %vm330, %v447, %v443
    %v449 = vlaneseq
    %v450 = vshrl.u32 %v449, 7
    %v451 = vsub.s32 %v320, %v450
    %v452 = vrot.slane %v213, %v451
    %v453 = vlaneseq
    %v454 = vshrl.u32 %v453, 7
    %v455 = vsub.s32 %v325, %v454
    %v456 = vrot.slane %v216, %v455
    %v457 = vsel %vm330, %v456, %v452
    %v458 = vlaneseq
    %v459 = vshrl.u32 %v458, 7
    %v460 = vsub.s32 %v320, %v459
    %v461 = vrot.slane %v219, %v460
    %v462 = vlaneseq
    %v463 = vshrl.u32 %v462, 7
    %v464 = vsub.s32 %v325, %v463
    %v465 = vrot.slane %v222, %v464
    %v466 = vsel %vm330, %v465, %v461
    %v467 = vlaneseq
    %v468 = vshrl.u32 %v467, 7
    %v469 = vsub.s32 %v320, %v468
    %v470 = vrot.slane %v225, %v469
    %v471 = vlaneseq
    %v472 = vshrl.u32 %v471, 7
    %v473 = vsub.s32 %v325, %v472
    %v474 = vrot.slane %v228, %v473
    %v475 = vsel %vm330, %v474, %v470
    %v476 = vlaneseq
    %v477 = vshrl.u32 %v476, 7
    %v478 = vsub.s32 %v320, %v477
    %v479 = vrot.slane %v231, %v478
    %v480 = vlaneseq
    %v481 = vshrl.u32 %v480, 7
    %v482 = vsub.s32 %v325, %v481
    %v483 = vrot.slane %v234, %v482
    %v484 = vsel %vm330, %v483, %v479
    %v485 = vlaneseq
    %v486 = vshrl.u32 %v485, 7
    %v487 = vsub.s32 %v320, %v486
    %v488 = vrot.slane %v237, %v487
    %v489 = vlaneseq
    %v490 = vshrl.u32 %v489, 7
    %v491 = vsub.s32 %v325, %v490
    %v492 = vrot.slane %v240, %v491
    %v493 = vsel %vm330, %v492, %v488
    %v494 = vlaneseq
    %v495 = vshrl.u32 %v494, 7
    %v496 = vsub.s32 %v320, %v495
    %v497 = vrot.slane %v243, %v496
    %v498 = vlaneseq
    %v499 = vshrl.u32 %v498, 7
    %v500 = vsub.s32 %v325, %v499
    %v501 = vrot.slane %v246, %v500
    %v502 = vsel %vm330, %v501, %v497
    %v503 = vlaneseq
    %v504 = vshrl.u32 %v503, 7
    %v505 = vsub.s32 %v320, %v504
    %v506 = vrot.slane %v249, %v505
    %v507 = vlaneseq
    %v508 = vshrl.u32 %v507, 7
    %v509 = vsub.s32 %v325, %v508
    %v510 = vrot.slane %v252, %v509
    %v511 = vsel %vm330, %v510, %v506
    %v512 = vlaneseq
    %v513 = vshrl.u32 %v512, 7
    %v514 = vsub.s32 %v320, %v513
    %v515 = vrot.slane %v255, %v514
    %v516 = vlaneseq
    %v517 = vshrl.u32 %v516, 7
    %v518 = vsub.s32 %v325, %v517
    %v519 = vrot.slane %v258, %v518
    %v520 = vsel %vm330, %v519, %v515
    %v521 = vlaneseq
    %v522 = vshrl.u32 %v521, 7
    %v523 = vsub.s32 %v320, %v522
    %v524 = vrot.slane %v261, %v523
    %v525 = vlaneseq
    %v526 = vshrl.u32 %v525, 7
    %v527 = vsub.s32 %v325, %v526
    %v528 = vrot.slane %v264, %v527
    %v529 = vsel %vm330, %v528, %v524
    %v530 = vlaneseq
    %v531 = vshrl.u32 %v530, 7
    %v532 = vsub.s32 %v320, %v531
    %v533 = vrot.slane %v267, %v532
    %v534 = vlaneseq
    %v535 = vshrl.u32 %v534, 7
    %v536 = vsub.s32 %v325, %v535
    %v537 = vrot.slane %v270, %v536
    %v538 = vsel %vm330, %v537, %v533
    %vm539 = vcmask 1041409
    %v540 = vsel %vm539, %v340, %v331
    %vm541 = vcmask 1042434
    %v542 = vsel %vm541, %v349, %v540
    %v543 = vsel %vm539, %v367, %v358
    %v544 = vsel %vm541, %v376, %v543
    %v545 = vsel %vm539, %v394, %v385
    %v546 = vsel %vm541, %v403, %v545
    %v547 = vsel %vm539, %v421, %v412
    %v548 = vsel %vm541, %v430, %v547
    %v549 = vsel %vm539, %v448, %v439
    %v550 = vsel %vm541, %v457, %v549
    %v551 = vsel %vm539, %v475, %v466
    %v552 = vsel %vm541, %v484, %v551
    %v553 = vsel %vm539, %v502, %v493
    %v554 = vsel %vm541, %v511, %v553
    %v555 = vsel %vm539, %v529, %v520
    %v556 = vsel %vm541, %v538, %v555
    %vm565 = vcmask 124928
    %v566 = vsel %vm565, %v542, 0.0
    %567 = vadd.xlane.f32.xlu0 %v566
    %v568 = vpop.xlane.xlu0 %567
    %v569 = vsel %vm565, %v544, 0.0
    %570 = vadd.xlane.f32.xlu0 %v569
    %v571 = vpop.xlane.xlu0 %570
    %v572 = vsel %vm565, %v546, 0.0
    %573 = vadd.xlane.f32.xlu0 %v572
    %v574 = vpop.xlane.xlu0 %573
    %v575 = vsel %vm565, %v548, 0.0
    %576 = vadd.xlane.f32.xlu0 %v575
    %v577 = vpop.xlane.xlu0 %576
    %v578 = vsel %vm565, %v550, 0.0
    %579 = vadd.xlane.f32.xlu0 %v578
    %v580 = vpop.xlane.xlu0 %579
    %v581 = vsel %vm565, %v552, 0.0
    %582 = vadd.xlane.f32.xlu0 %v581
    %v583 = vpop.xlane.xlu0 %582
    %v584 = vsel %vm565, %v554, 0.0
    %585 = vadd.xlane.f32.xlu0 %v584
    %v586 = vpop.xlane.xlu0 %585
    %v587 = vsel %vm565, %v556, 0.0
    %588 = vadd.xlane.f32.xlu0 %v587
    %v589 = vpop.xlane.xlu0 %588
    %v590 = vmul.f32 %v568, 0.00390625
    %v591 = vmul.f32 %v571, 0.00390625
    %v592 = vmul.f32 %v574, 0.00390625
    %v593 = vmul.f32 %v577, 0.00390625
    %v594 = vmul.f32 %v580, 0.00390625
    %v595 = vmul.f32 %v583, 0.00390625
    %v596 = vmul.f32 %v586, 0.00390625
    %v597 = vmul.f32 %v589, 0.00390625
    %v598 = vld [vmem:[#allocation5] sm:$0x7]
    %v599 = vlaneseq
    %v600 = vshrl.u32 %v599, 7
    %v601 = vsub.s32 0, %v600
    %v602 = vrot.slane %v590, %v601
    %v603 = vlaneseq
    %v604 = vshrl.u32 %v603, 7
    %v605 = vsub.s32 0, %v604
    %v606 = vrot.slane %v591, %v605
    %v607 = vlaneseq
    %v608 = vshrl.u32 %v607, 7
    %v609 = vsub.s32 0, %v608
    %v610 = vrot.slane %v592, %v609
    %v611 = vlaneseq
    %v612 = vshrl.u32 %v611, 7
    %v613 = vsub.s32 0, %v612
    %v614 = vrot.slane %v593, %v613
    %v615 = vlaneseq
    %v616 = vshrl.u32 %v615, 7
    %v617 = vsub.s32 0, %v616
    %v618 = vrot.slane %v594, %v617
    %v619 = vlaneseq
    %v620 = vshrl.u32 %v619, 7
    %v621 = vsub.s32 0, %v620
    %v622 = vrot.slane %v595, %v621
    %v623 = vlaneseq
    %v624 = vshrl.u32 %v623, 7
    %v625 = vsub.s32 0, %v624
    %v626 = vrot.slane %v596, %v625
    %v627 = vlaneseq
    %v628 = vshrl.u32 %v627, 7
    %v629 = vsub.s32 0, %v628
    %v630 = vrot.slane %v597, %v629
    %v631 = vlaneseq
    %v632 = vshrl.u32 %v631, 7
    %v633 = vsub.s32 0, %v632
    %v634 = vrot.slane %v598, %v633
    %637 = vbcast.lane.b32.xlu0 %v634, 256
    %v638 = vpop.permute.xlu0 %637
    %s640 = sor.u32 256, 8
    %641 = vbcast.lane.b32.xlu0 %v634, %s640
    %v642 = vpop.permute.xlu0 %641
    %s644 = sor.u32 256, 16
    %645 = vbcast.lane.b32.xlu0 %v634, %s644
    %v646 = vpop.permute.xlu0 %645
    %s648 = sor.u32 256, 24
    %649 = vbcast.lane.b32.xlu0 %v634, %s648
    %v650 = vpop.permute.xlu0 %649
    %s652 = sor.u32 256, 32
    %653 = vbcast.lane.b32.xlu0 %v634, %s652
    %v654 = vpop.permute.xlu0 %653
    %s656 = sor.u32 256, 40
    %657 = vbcast.lane.b32.xlu0 %v634, %s656
    %v658 = vpop.permute.xlu0 %657
    %s660 = sor.u32 256, 48
    %661 = vbcast.lane.b32.xlu0 %v634, %s660
    %v662 = vpop.permute.xlu0 %661
    %s664 = sor.u32 256, 56
    %665 = vbcast.lane.b32.xlu0 %v634, %s664
    %v666 = vpop.permute.xlu0 %665
    %s668 = sor.u32 256, 64
    %669 = vbcast.lane.b32.xlu0 %v634, %s668
    %v670 = vpop.permute.xlu0 %669
    %s672 = sor.u32 256, 72
    %673 = vbcast.lane.b32.xlu0 %v634, %s672
    %v674 = vpop.permute.xlu0 %673
    %s676 = sor.u32 256, 80
    %677 = vbcast.lane.b32.xlu0 %v634, %s676
    %v678 = vpop.permute.xlu0 %677
    %s680 = sor.u32 256, 88
    %681 = vbcast.lane.b32.xlu0 %v634, %s680
    %v682 = vpop.permute.xlu0 %681
    %s684 = sor.u32 256, 96
    %685 = vbcast.lane.b32.xlu0 %v634, %s684
    %v686 = vpop.permute.xlu0 %685
    %s688 = sor.u32 256, 104
    %689 = vbcast.lane.b32.xlu0 %v634, %s688
    %v690 = vpop.permute.xlu0 %689
    %s692 = sor.u32 256, 112
    %693 = vbcast.lane.b32.xlu0 %v634, %s692
    %v694 = vpop.permute.xlu0 %693
    %s696 = sor.u32 256, 120
    %697 = vbcast.lane.b32.xlu0 %v634, %s696
    %v698 = vpop.permute.xlu0 %697
    %v715 = vmul.f32 %v602, %v638
    %v716 = vmul.f32 %v602, %v642
    %v717 = vmul.f32 %v602, %v646
    %v718 = vmul.f32 %v602, %v650
    %v719 = vmul.f32 %v602, %v654
    %v720 = vmul.f32 %v602, %v658
    %v721 = vmul.f32 %v602, %v662
    %v722 = vmul.f32 %v602, %v666
    %v723 = vmul.f32 %v602, %v670
    %v724 = vmul.f32 %v602, %v674
    %v725 = vmul.f32 %v602, %v678
    %v726 = vmul.f32 %v602, %v682
    %v727 = vmul.f32 %v602, %v686
    %v728 = vmul.f32 %v602, %v690
    %v729 = vmul.f32 %v602, %v694
    %v730 = vmul.f32 %v602, %v698
    %v731 = vmul.f32 %v606, %v638
    %v732 = vmul.f32 %v606, %v642
    %v733 = vmul.f32 %v606, %v646
    %v734 = vmul.f32 %v606, %v650
    %v735 = vmul.f32 %v606, %v654
    %v736 = vmul.f32 %v606, %v658
    %v737 = vmul.f32 %v606, %v662
    %v738 = vmul.f32 %v606, %v666
    %v739 = vmul.f32 %v606, %v670
    %v740 = vmul.f32 %v606, %v674
    %v741 = vmul.f32 %v606, %v678
    %v742 = vmul.f32 %v606, %v682
    %v743 = vmul.f32 %v606, %v686
    %v744 = vmul.f32 %v606, %v690
    %v745 = vmul.f32 %v606, %v694
    %v746 = vmul.f32 %v606, %v698
    %v747 = vmul.f32 %v610, %v638
    %v748 = vmul.f32 %v610, %v642
    %v749 = vmul.f32 %v610, %v646
    %v750 = vmul.f32 %v610, %v650
    %v751 = vmul.f32 %v610, %v654
    %v752 = vmul.f32 %v610, %v658
    %v753 = vmul.f32 %v610, %v662
    %v754 = vmul.f32 %v610, %v666
    %v755 = vmul.f32 %v610, %v670
    %v756 = vmul.f32 %v610, %v674
    %v757 = vmul.f32 %v610, %v678
    %v758 = vmul.f32 %v610, %v682
    %v759 = vmul.f32 %v610, %v686
    %v760 = vmul.f32 %v610, %v690
    %v761 = vmul.f32 %v610, %v694
    %v762 = vmul.f32 %v610, %v698
    %v763 = vmul.f32 %v614, %v638
    %v764 = vmul.f32 %v614, %v642
    %v765 = vmul.f32 %v614, %v646
    %v766 = vmul.f32 %v614, %v650
    %v767 = vmul.f32 %v614, %v654
    %v768 = vmul.f32 %v614, %v658
    %v769 = vmul.f32 %v614, %v662
    %v770 = vmul.f32 %v614, %v666
    %v771 = vmul.f32 %v614, %v670
    %v772 = vmul.f32 %v614, %v674
    %v773 = vmul.f32 %v614, %v678
    %v774 = vmul.f32 %v614, %v682
    %v775 = vmul.f32 %v614, %v686
    %v776 = vmul.f32 %v614, %v690
    %v777 = vmul.f32 %v614, %v694
    %v778 = vmul.f32 %v614, %v698
    %v779 = vmul.f32 %v618, %v638
    %v780 = vmul.f32 %v618, %v642
    %v781 = vmul.f32 %v618, %v646
    %v782 = vmul.f32 %v618, %v650
    %v783 = vmul.f32 %v618, %v654
    %v784 = vmul.f32 %v618, %v658
    %v785 = vmul.f32 %v618, %v662
    %v786 = vmul.f32 %v618, %v666
    %v787 = vmul.f32 %v618, %v670
    %v788 = vmul.f32 %v618, %v674
    %v789 = vmul.f32 %v618, %v678
    %v790 = vmul.f32 %v618, %v682
    %v791 = vmul.f32 %v618, %v686
    %v792 = vmul.f32 %v618, %v690
    %v793 = vmul.f32 %v618, %v694
    %v794 = vmul.f32 %v618, %v698
    %v795 = vmul.f32 %v622, %v638
    %v796 = vmul.f32 %v622, %v642
    %v797 = vmul.f32 %v622, %v646
    %v798 = vmul.f32 %v622, %v650
    %v799 = vmul.f32 %v622, %v654
    %v800 = vmul.f32 %v622, %v658
    %v801 = vmul.f32 %v622, %v662
    %v802 = vmul.f32 %v622, %v666
    %v803 = vmul.f32 %v622, %v670
    %v804 = vmul.f32 %v622, %v674
    %v805 = vmul.f32 %v622, %v678
    %v806 = vmul.f32 %v622, %v682
    %v807 = vmul.f32 %v622, %v686
    %v808 = vmul.f32 %v622, %v690
    %v809 = vmul.f32 %v622, %v694
    %v810 = vmul.f32 %v622, %v698
    %v811 = vmul.f32 %v626, %v638
    %v812 = vmul.f32 %v626, %v642
    %v813 = vmul.f32 %v626, %v646
    %v814 = vmul.f32 %v626, %v650
    %v815 = vmul.f32 %v626, %v654
    %v816 = vmul.f32 %v626, %v658
    %v817 = vmul.f32 %v626, %v662
    %v818 = vmul.f32 %v626, %v666
    %v819 = vmul.f32 %v626, %v670
    %v820 = vmul.f32 %v626, %v674
    %v821 = vmul.f32 %v626, %v678
    %v822 = vmul.f32 %v626, %v682
    %v823 = vmul.f32 %v626, %v686
    %v824 = vmul.f32 %v626, %v690
    %v825 = vmul.f32 %v626, %v694
    %v826 = vmul.f32 %v626, %v698
    %v827 = vmul.f32 %v630, %v638
    %v828 = vmul.f32 %v630, %v642
    %v829 = vmul.f32 %v630, %v646
    %v830 = vmul.f32 %v630, %v650
    %v831 = vmul.f32 %v630, %v654
    %v832 = vmul.f32 %v630, %v658
    %v833 = vmul.f32 %v630, %v662
    %v834 = vmul.f32 %v630, %v666
    %v835 = vmul.f32 %v630, %v670
    %v836 = vmul.f32 %v630, %v674
    %v837 = vmul.f32 %v630, %v678
    %v838 = vmul.f32 %v630, %v682
    %v839 = vmul.f32 %v630, %v686
    %v840 = vmul.f32 %v630, %v690
    %v841 = vmul.f32 %v630, %v694
    %v842 = vmul.f32 %v630, %v698
    %v843 = vlaneseq
    %v844 = vshrl.u32 %v843, 7
    %v845 = vsub.s32 1, %v844
    %v846 = vrot.slane %v590, %v845
    %v847 = vlaneseq
    %v848 = vshrl.u32 %v847, 7
    %v849 = vsub.s32 1, %v848
    %v850 = vrot.slane %v591, %v849
    %v851 = vlaneseq
    %v852 = vshrl.u32 %v851, 7
    %v853 = vsub.s32 1, %v852
    %v854 = vrot.slane %v592, %v853
    %v855 = vlaneseq
    %v856 = vshrl.u32 %v855, 7
    %v857 = vsub.s32 1, %v856
    %v858 = vrot.slane %v593, %v857
    %v859 = vlaneseq
    %v860 = vshrl.u32 %v859, 7
    %v861 = vsub.s32 1, %v860
    %v862 = vrot.slane %v594, %v861
    %v863 = vlaneseq
    %v864 = vshrl.u32 %v863, 7
    %v865 = vsub.s32 1, %v864
    %v866 = vrot.slane %v595, %v865
    %v867 = vlaneseq
    %v868 = vshrl.u32 %v867, 7
    %v869 = vsub.s32 1, %v868
    %v870 = vrot.slane %v596, %v869
    %v871 = vlaneseq
    %v872 = vshrl.u32 %v871, 7
    %v873 = vsub.s32 1, %v872
    %v874 = vrot.slane %v597, %v873
    %v875 = vlaneseq
    %v876 = vshrl.u32 %v875, 7
    %v877 = vsub.s32 1, %v876
    %v878 = vrot.slane %v598, %v877
    %881 = vbcast.lane.b32.xlu0 %v878, 256
    %v882 = vpop.permute.xlu0 %881
    %s884 = sor.u32 256, 8
    %885 = vbcast.lane.b32.xlu0 %v878, %s884
    %v886 = vpop.permute.xlu0 %885
    %s888 = sor.u32 256, 16
    %889 = vbcast.lane.b32.xlu0 %v878, %s888
    %v890 = vpop.permute.xlu0 %889
    %s892 = sor.u32 256, 24
    %893 = vbcast.lane.b32.xlu0 %v878, %s892
    %v894 = vpop.permute.xlu0 %893
    %s896 = sor.u32 256, 32
    %897 = vbcast.lane.b32.xlu0 %v878, %s896
    %v898 = vpop.permute.xlu0 %897
    %s900 = sor.u32 256, 40
    %901 = vbcast.lane.b32.xlu0 %v878, %s900
    %v902 = vpop.permute.xlu0 %901
    %s904 = sor.u32 256, 48
    %905 = vbcast.lane.b32.xlu0 %v878, %s904
    %v906 = vpop.permute.xlu0 %905
    %s908 = sor.u32 256, 56
    %909 = vbcast.lane.b32.xlu0 %v878, %s908
    %v910 = vpop.permute.xlu0 %909
    %s912 = sor.u32 256, 64
    %913 = vbcast.lane.b32.xlu0 %v878, %s912
    %v914 = vpop.permute.xlu0 %913
    %s916 = sor.u32 256, 72
    %917 = vbcast.lane.b32.xlu0 %v878, %s916
    %v918 = vpop.permute.xlu0 %917
    %s920 = sor.u32 256, 80
    %921 = vbcast.lane.b32.xlu0 %v878, %s920
    %v922 = vpop.permute.xlu0 %921
    %s924 = sor.u32 256, 88
    %925 = vbcast.lane.b32.xlu0 %v878, %s924
    %v926 = vpop.permute.xlu0 %925
    %s928 = sor.u32 256, 96
    %929 = vbcast.lane.b32.xlu0 %v878, %s928
    %v930 = vpop.permute.xlu0 %929
    %s932 = sor.u32 256, 104
    %933 = vbcast.lane.b32.xlu0 %v878, %s932
    %v934 = vpop.permute.xlu0 %933
    %s936 = sor.u32 256, 112
    %937 = vbcast.lane.b32.xlu0 %v878, %s936
    %v938 = vpop.permute.xlu0 %937
    %s940 = sor.u32 256, 120
    %941 = vbcast.lane.b32.xlu0 %v878, %s940
    %v942 = vpop.permute.xlu0 %941
    %v959 = vmul.f32 %v846, %v882
    %v960 = vmul.f32 %v846, %v886
    %v961 = vmul.f32 %v846, %v890
    %v962 = vmul.f32 %v846, %v894
    %v963 = vmul.f32 %v846, %v898
    %v964 = vmul.f32 %v846, %v902
    %v965 = vmul.f32 %v846, %v906
    %v966 = vmul.f32 %v846, %v910
    %v967 = vmul.f32 %v846, %v914
    %v968 = vmul.f32 %v846, %v918
    %v969 = vmul.f32 %v846, %v922
    %v970 = vmul.f32 %v846, %v926
    %v971 = vmul.f32 %v846, %v930
    %v972 = vmul.f32 %v846, %v934
    %v973 = vmul.f32 %v846, %v938
    %v974 = vmul.f32 %v846, %v942
    %v975 = vmul.f32 %v850, %v882
    %v976 = vmul.f32 %v850, %v886
    %v977 = vmul.f32 %v850, %v890
    %v978 = vmul.f32 %v850, %v894
    %v979 = vmul.f32 %v850, %v898
    %v980 = vmul.f32 %v850, %v902
    %v981 = vmul.f32 %v850, %v906
    %v982 = vmul.f32 %v850, %v910
    %v983 = vmul.f32 %v850, %v914
    %v984 = vmul.f32 %v850, %v918
    %v985 = vmul.f32 %v850, %v922
    %v986 = vmul.f32 %v850, %v926
    %v987 = vmul.f32 %v850, %v930
    %v988 = vmul.f32 %v850, %v934
    %v989 = vmul.f32 %v850, %v938
    %v990 = vmul.f32 %v850, %v942
    %v991 = vmul.f32 %v854, %v882
    %v992 = vmul.f32 %v854, %v886
    %v993 = vmul.f32 %v854, %v890
    %v994 = vmul.f32 %v854, %v894
    %v995 = vmul.f32 %v854, %v898
    %v996 = vmul.f32 %v854, %v902
    %v997 = vmul.f32 %v854, %v906
    %v998 = vmul.f32 %v854, %v910
    %v999 = vmul.f32 %v854, %v914
    %v1000 = vmul.f32 %v854, %v918
    %v1001 = vmul.f32 %v854, %v922
    %v1002 = vmul.f32 %v854, %v926
    %v1003 = vmul.f32 %v854, %v930
    %v1004 = vmul.f32 %v854, %v934
    %v1005 = vmul.f32 %v854, %v938
    %v1006 = vmul.f32 %v854, %v942
    %v1007 = vmul.f32 %v858, %v882
    %v1008 = vmul.f32 %v858, %v886
    %v1009 = vmul.f32 %v858, %v890
    %v1010 = vmul.f32 %v858, %v894
    %v1011 = vmul.f32 %v858, %v898
    %v1012 = vmul.f32 %v858, %v902
    %v1013 = vmul.f32 %v858, %v906
    %v1014 = vmul.f32 %v858, %v910
    %v1015 = vmul.f32 %v858, %v914
    %v1016 = vmul.f32 %v858, %v918
    %v1017 = vmul.f32 %v858, %v922
    %v1018 = vmul.f32 %v858, %v926
    %v1019 = vmul.f32 %v858, %v930
    %v1020 = vmul.f32 %v858, %v934
    %v1021 = vmul.f32 %v858, %v938
    %v1022 = vmul.f32 %v858, %v942
    %v1023 = vmul.f32 %v862, %v882
    %v1024 = vmul.f32 %v862, %v886
    %v1025 = vmul.f32 %v862, %v890
    %v1026 = vmul.f32 %v862, %v894
    %v1027 = vmul.f32 %v862, %v898
    %v1028 = vmul.f32 %v862, %v902
    %v1029 = vmul.f32 %v862, %v906
    %v1030 = vmul.f32 %v862, %v910
    %v1031 = vmul.f32 %v862, %v914
    %v1032 = vmul.f32 %v862, %v918
    %v1033 = vmul.f32 %v862, %v922
    %v1034 = vmul.f32 %v862, %v926
    %v1035 = vmul.f32 %v862, %v930
    %v1036 = vmul.f32 %v862, %v934
    %v1037 = vmul.f32 %v862, %v938
    %v1038 = vmul.f32 %v862, %v942
    %v1039 = vmul.f32 %v866, %v882
    %v1040 = vmul.f32 %v866, %v886
    %v1041 = vmul.f32 %v866, %v890
    %v1042 = vmul.f32 %v866, %v894
    %v1043 = vmul.f32 %v866, %v898
    %v1044 = vmul.f32 %v866, %v902
    %v1045 = vmul.f32 %v866, %v906
    %v1046 = vmul.f32 %v866, %v910
    %v1047 = vmul.f32 %v866, %v914
    %v1048 = vmul.f32 %v866, %v918
    %v1049 = vmul.f32 %v866, %v922
    %v1050 = vmul.f32 %v866, %v926
    %v1051 = vmul.f32 %v866, %v930
    %v1052 = vmul.f32 %v866, %v934
    %v1053 = vmul.f32 %v866, %v938
    %v1054 = vmul.f32 %v866, %v942
    %v1055 = vmul.f32 %v870, %v882
    %v1056 = vmul.f32 %v870, %v886
    %v1057 = vmul.f32 %v870, %v890
    %v1058 = vmul.f32 %v870, %v894
    %v1059 = vmul.f32 %v870, %v898
    %v1060 = vmul.f32 %v870, %v902
    %v1061 = vmul.f32 %v870, %v906
    %v1062 = vmul.f32 %v870, %v910
    %v1063 = vmul.f32 %v870, %v914
    %v1064 = vmul.f32 %v870, %v918
    %v1065 = vmul.f32 %v870, %v922
    %v1066 = vmul.f32 %v870, %v926
    %v1067 = vmul.f32 %v870, %v930
    %v1068 = vmul.f32 %v870, %v934
    %v1069 = vmul.f32 %v870, %v938
    %v1070 = vmul.f32 %v870, %v942
    %v1071 = vmul.f32 %v874, %v882
    %v1072 = vmul.f32 %v874, %v886
    %v1073 = vmul.f32 %v874, %v890
    %v1074 = vmul.f32 %v874, %v894
    %v1075 = vmul.f32 %v874, %v898
    %v1076 = vmul.f32 %v874, %v902
    %v1077 = vmul.f32 %v874, %v906
    %v1078 = vmul.f32 %v874, %v910
    %v1079 = vmul.f32 %v874, %v914
    %v1080 = vmul.f32 %v874, %v918
    %v1081 = vmul.f32 %v874, %v922
    %v1082 = vmul.f32 %v874, %v926
    %v1083 = vmul.f32 %v874, %v930
    %v1084 = vmul.f32 %v874, %v934
    %v1085 = vmul.f32 %v874, %v938
    %v1086 = vmul.f32 %v874, %v942
    %v1087 = vadd.f32 %v715, %v959
    %v1088 = vadd.f32 %v716, %v960
    %v1089 = vadd.f32 %v717, %v961
    %v1090 = vadd.f32 %v718, %v962
    %v1091 = vadd.f32 %v719, %v963
    %v1092 = vadd.f32 %v720, %v964
    %v1093 = vadd.f32 %v721, %v965
    %v1094 = vadd.f32 %v722, %v966
    %v1095 = vadd.f32 %v723, %v967
    %v1096 = vadd.f32 %v724, %v968
    %v1097 = vadd.f32 %v725, %v969
    %v1098 = vadd.f32 %v726, %v970
    %v1099 = vadd.f32 %v727, %v971
    %v1100 = vadd.f32 %v728, %v972
    %v1101 = vadd.f32 %v729, %v973
    %v1102 = vadd.f32 %v730, %v974
    %v1103 = vadd.f32 %v731, %v975
    %v1104 = vadd.f32 %v732, %v976
    %v1105 = vadd.f32 %v733, %v977
    %v1106 = vadd.f32 %v734, %v978
    %v1107 = vadd.f32 %v735, %v979
    %v1108 = vadd.f32 %v736, %v980
    %v1109 = vadd.f32 %v737, %v981
    %v1110 = vadd.f32 %v738, %v982
    %v1111 = vadd.f32 %v739, %v983
    %v1112 = vadd.f32 %v740, %v984
    %v1113 = vadd.f32 %v741, %v985
    %v1114 = vadd.f32 %v742, %v986
    %v1115 = vadd.f32 %v743, %v987
    %v1116 = vadd.f32 %v744, %v988
    %v1117 = vadd.f32 %v745, %v989
    %v1118 = vadd.f32 %v746, %v990
    %v1119 = vadd.f32 %v747, %v991
    %v1120 = vadd.f32 %v748, %v992
    %v1121 = vadd.f32 %v749, %v993
    %v1122 = vadd.f32 %v750, %v994
    %v1123 = vadd.f32 %v751, %v995
    %v1124 = vadd.f32 %v752, %v996
    %v1125 = vadd.f32 %v753, %v997
    %v1126 = vadd.f32 %v754, %v998
    %v1127 = vadd.f32 %v755, %v999
    %v1128 = vadd.f32 %v756, %v1000
    %v1129 = vadd.f32 %v757, %v1001
    %v1130 = vadd.f32 %v758, %v1002
    %v1131 = vadd.f32 %v759, %v1003
    %v1132 = vadd.f32 %v760, %v1004
    %v1133 = vadd.f32 %v761, %v1005
    %v1134 = vadd.f32 %v762, %v1006
    %v1135 = vadd.f32 %v763, %v1007
    %v1136 = vadd.f32 %v764, %v1008
    %v1137 = vadd.f32 %v765, %v1009
    %v1138 = vadd.f32 %v766, %v1010
    %v1139 = vadd.f32 %v767, %v1011
    %v1140 = vadd.f32 %v768, %v1012
    %v1141 = vadd.f32 %v769, %v1013
    %v1142 = vadd.f32 %v770, %v1014
    %v1143 = vadd.f32 %v771, %v1015
    %v1144 = vadd.f32 %v772, %v1016
    %v1145 = vadd.f32 %v773, %v1017
    %v1146 = vadd.f32 %v774, %v1018
    %v1147 = vadd.f32 %v775, %v1019
    %v1148 = vadd.f32 %v776, %v1020
    %v1149 = vadd.f32 %v777, %v1021
    %v1150 = vadd.f32 %v778, %v1022
    %v1151 = vadd.f32 %v779, %v1023
    %v1152 = vadd.f32 %v780, %v1024
    %v1153 = vadd.f32 %v781, %v1025
    %v1154 = vadd.f32 %v782, %v1026
    %v1155 = vadd.f32 %v783, %v1027
    %v1156 = vadd.f32 %v784, %v1028
    %v1157 = vadd.f32 %v785, %v1029
    %v1158 = vadd.f32 %v786, %v1030
    %v1159 = vadd.f32 %v787, %v1031
    %v1160 = vadd.f32 %v788, %v1032
    %v1161 = vadd.f32 %v789, %v1033
    %v1162 = vadd.f32 %v790, %v1034
    %v1163 = vadd.f32 %v791, %v1035
    %v1164 = vadd.f32 %v792, %v1036
    %v1165 = vadd.f32 %v793, %v1037
    %v1166 = vadd.f32 %v794, %v1038
    %v1167 = vadd.f32 %v795, %v1039
    %v1168 = vadd.f32 %v796, %v1040
    %v1169 = vadd.f32 %v797, %v1041
    %v1170 = vadd.f32 %v798, %v1042
    %v1171 = vadd.f32 %v799, %v1043
    %v1172 = vadd.f32 %v800, %v1044
    %v1173 = vadd.f32 %v801, %v1045
    %v1174 = vadd.f32 %v802, %v1046
    %v1175 = vadd.f32 %v803, %v1047
    %v1176 = vadd.f32 %v804, %v1048
    %v1177 = vadd.f32 %v805, %v1049
    %v1178 = vadd.f32 %v806, %v1050
    %v1179 = vadd.f32 %v807, %v1051
    %v1180 = vadd.f32 %v808, %v1052
    %v1181 = vadd.f32 %v809, %v1053
    %v1182 = vadd.f32 %v810, %v1054
    %v1183 = vadd.f32 %v811, %v1055
    %v1184 = vadd.f32 %v812, %v1056
    %v1185 = vadd.f32 %v813, %v1057
    %v1186 = vadd.f32 %v814, %v1058
    %v1187 = vadd.f32 %v815, %v1059
    %v1188 = vadd.f32 %v816, %v1060
    %v1189 = vadd.f32 %v817, %v1061
    %v1190 = vadd.f32 %v818, %v1062
    %v1191 = vadd.f32 %v819, %v1063
    %v1192 = vadd.f32 %v820, %v1064
    %v1193 = vadd.f32 %v821, %v1065
    %v1194 = vadd.f32 %v822, %v1066
    %v1195 = vadd.f32 %v823, %v1067
    %v1196 = vadd.f32 %v824, %v1068
    %v1197 = vadd.f32 %v825, %v1069
    %v1198 = vadd.f32 %v826, %v1070
    %v1199 = vadd.f32 %v827, %v1071
    %v1200 = vadd.f32 %v828, %v1072
    %v1201 = vadd.f32 %v829, %v1073
    %v1202 = vadd.f32 %v830, %v1074
    %v1203 = vadd.f32 %v831, %v1075
    %v1204 = vadd.f32 %v832, %v1076
    %v1205 = vadd.f32 %v833, %v1077
    %v1206 = vadd.f32 %v834, %v1078
    %v1207 = vadd.f32 %v835, %v1079
    %v1208 = vadd.f32 %v836, %v1080
    %v1209 = vadd.f32 %v837, %v1081
    %v1210 = vadd.f32 %v838, %v1082
    %v1211 = vadd.f32 %v839, %v1083
    %v1212 = vadd.f32 %v840, %v1084
    %v1213 = vadd.f32 %v841, %v1085
    %v1214 = vadd.f32 %v842, %v1086
    %v1215 = vlaneseq
    %v1216 = vshrl.u32 %v1215, 7
    %v1217 = vsub.s32 2, %v1216
    %v1218 = vrot.slane %v590, %v1217
    %v1219 = vlaneseq
    %v1220 = vshrl.u32 %v1219, 7
    %v1221 = vsub.s32 2, %v1220
    %v1222 = vrot.slane %v591, %v1221
    %v1223 = vlaneseq
    %v1224 = vshrl.u32 %v1223, 7
    %v1225 = vsub.s32 2, %v1224
    %v1226 = vrot.slane %v592, %v1225
    %v1227 = vlaneseq
    %v1228 = vshrl.u32 %v1227, 7
    %v1229 = vsub.s32 2, %v1228
    %v1230 = vrot.slane %v593, %v1229
    %v1231 = vlaneseq
    %v1232 = vshrl.u32 %v1231, 7
    %v1233 = vsub.s32 2, %v1232
    %v1234 = vrot.slane %v594, %v1233
    %v1235 = vlaneseq
    %v1236 = vshrl.u32 %v1235, 7
    %v1237 = vsub.s32 2, %v1236
    %v1238 = vrot.slane %v595, %v1237
    %v1239 = vlaneseq
    %v1240 = vshrl.u32 %v1239, 7
    %v1241 = vsub.s32 2, %v1240
    %v1242 = vrot.slane %v596, %v1241
    %v1243 = vlaneseq
    %v1244 = vshrl.u32 %v1243, 7
    %v1245 = vsub.s32 2, %v1244
    %v1246 = vrot.slane %v597, %v1245
    %v1247 = vlaneseq
    %v1248 = vshrl.u32 %v1247, 7
    %v1249 = vsub.s32 2, %v1248
    %v1250 = vrot.slane %v598, %v1249
    %1253 = vbcast.lane.b32.xlu0 %v1250, 256
    %v1254 = vpop.permute.xlu0 %1253
    %s1256 = sor.u32 256, 8
    %1257 = vbcast.lane.b32.xlu0 %v1250, %s1256
    %v1258 = vpop.permute.xlu0 %1257
    %s1260 = sor.u32 256, 16
    %1261 = vbcast.lane.b32.xlu0 %v1250, %s1260
    %v1262 = vpop.permute.xlu0 %1261
    %s1264 = sor.u32 256, 24
    %1265 = vbcast.lane.b32.xlu0 %v1250, %s1264
    %v1266 = vpop.permute.xlu0 %1265
    %s1268 = sor.u32 256, 32
    %1269 = vbcast.lane.b32.xlu0 %v1250, %s1268
    %v1270 = vpop.permute.xlu0 %1269
    %s1272 = sor.u32 256, 40
    %1273 = vbcast.lane.b32.xlu0 %v1250, %s1272
    %v1274 = vpop.permute.xlu0 %1273
    %s1276 = sor.u32 256, 48
    %1277 = vbcast.lane.b32.xlu0 %v1250, %s1276
    %v1278 = vpop.permute.xlu0 %1277
    %s1280 = sor.u32 256, 56
    %1281 = vbcast.lane.b32.xlu0 %v1250, %s1280
    %v1282 = vpop.permute.xlu0 %1281
    %s1284 = sor.u32 256, 64
    %1285 = vbcast.lane.b32.xlu0 %v1250, %s1284
    %v1286 = vpop.permute.xlu0 %1285
    %s1288 = sor.u32 256, 72
    %1289 = vbcast.lane.b32.xlu0 %v1250, %s1288
    %v1290 = vpop.permute.xlu0 %1289
    %s1292 = sor.u32 256, 80
    %1293 = vbcast.lane.b32.xlu0 %v1250, %s1292
    %v1294 = vpop.permute.xlu0 %1293
    %s1296 = sor.u32 256, 88
    %1297 = vbcast.lane.b32.xlu0 %v1250, %s1296
    %v1298 = vpop.permute.xlu0 %1297
    %s1300 = sor.u32 256, 96
    %1301 = vbcast.lane.b32.xlu0 %v1250, %s1300
    %v1302 = vpop.permute.xlu0 %1301
    %s1304 = sor.u32 256, 104
    %1305 = vbcast.lane.b32.xlu0 %v1250, %s1304
    %v1306 = vpop.permute.xlu0 %1305
    %s1308 = sor.u32 256, 112
    %1309 = vbcast.lane.b32.xlu0 %v1250, %s1308
    %v1310 = vpop.permute.xlu0 %1309
    %s1312 = sor.u32 256, 120
    %1313 = vbcast.lane.b32.xlu0 %v1250, %s1312
    %v1314 = vpop.permute.xlu0 %1313
    %v1331 = vmul.f32 %v1218, %v1254
    %v1332 = vmul.f32 %v1218, %v1258
    %v1333 = vmul.f32 %v1218, %v1262
    %v1334 = vmul.f32 %v1218, %v1266
    %v1335 = vmul.f32 %v1218, %v1270
    %v1336 = vmul.f32 %v1218, %v1274
    %v1337 = vmul.f32 %v1218, %v1278
    %v1338 = vmul.f32 %v1218, %v1282
    %v1339 = vmul.f32 %v1218, %v1286
    %v1340 = vmul.f32 %v1218, %v1290
    %v1341 = vmul.f32 %v1218, %v1294
    %v1342 = vmul.f32 %v1218, %v1298
    %v1343 = vmul.f32 %v1218, %v1302
    %v1344 = vmul.f32 %v1218, %v1306
    %v1345 = vmul.f32 %v1218, %v1310
    %v1346 = vmul.f32 %v1218, %v1314
    %v1347 = vmul.f32 %v1222, %v1254
    %v1348 = vmul.f32 %v1222, %v1258
    %v1349 = vmul.f32 %v1222, %v1262
    %v1350 = vmul.f32 %v1222, %v1266
    %v1351 = vmul.f32 %v1222, %v1270
    %v1352 = vmul.f32 %v1222, %v1274
    %v1353 = vmul.f32 %v1222, %v1278
    %v1354 = vmul.f32 %v1222, %v1282
    %v1355 = vmul.f32 %v1222, %v1286
    %v1356 = vmul.f32 %v1222, %v1290
    %v1357 = vmul.f32 %v1222, %v1294
    %v1358 = vmul.f32 %v1222, %v1298
    %v1359 = vmul.f32 %v1222, %v1302
    %v1360 = vmul.f32 %v1222, %v1306
    %v1361 = vmul.f32 %v1222, %v1310
    %v1362 = vmul.f32 %v1222, %v1314
    %v1363 = vmul.f32 %v1226, %v1254
    %v1364 = vmul.f32 %v1226, %v1258
    %v1365 = vmul.f32 %v1226, %v1262
    %v1366 = vmul.f32 %v1226, %v1266
    %v1367 = vmul.f32 %v1226, %v1270
    %v1368 = vmul.f32 %v1226, %v1274
    %v1369 = vmul.f32 %v1226, %v1278
    %v1370 = vmul.f32 %v1226, %v1282
    %v1371 = vmul.f32 %v1226, %v1286
    %v1372 = vmul.f32 %v1226, %v1290
    %v1373 = vmul.f32 %v1226, %v1294
    %v1374 = vmul.f32 %v1226, %v1298
    %v1375 = vmul.f32 %v1226, %v1302
    %v1376 = vmul.f32 %v1226, %v1306
    %v1377 = vmul.f32 %v1226, %v1310
    %v1378 = vmul.f32 %v1226, %v1314
    %v1379 = vmul.f32 %v1230, %v1254
    %v1380 = vmul.f32 %v1230, %v1258
    %v1381 = vmul.f32 %v1230, %v1262
    %v1382 = vmul.f32 %v1230, %v1266
    %v1383 = vmul.f32 %v1230, %v1270
    %v1384 = vmul.f32 %v1230, %v1274
    %v1385 = vmul.f32 %v1230, %v1278
    %v1386 = vmul.f32 %v1230, %v1282
    %v1387 = vmul.f32 %v1230, %v1286
    %v1388 = vmul.f32 %v1230, %v1290
    %v1389 = vmul.f32 %v1230, %v1294
    %v1390 = vmul.f32 %v1230, %v1298
    %v1391 = vmul.f32 %v1230, %v1302
    %v1392 = vmul.f32 %v1230, %v1306
    %v1393 = vmul.f32 %v1230, %v1310
    %v1394 = vmul.f32 %v1230, %v1314
    %v1395 = vmul.f32 %v1234, %v1254
    %v1396 = vmul.f32 %v1234, %v1258
    %v1397 = vmul.f32 %v1234, %v1262
    %v1398 = vmul.f32 %v1234, %v1266
    %v1399 = vmul.f32 %v1234, %v1270
    %v1400 = vmul.f32 %v1234, %v1274
    %v1401 = vmul.f32 %v1234, %v1278
    %v1402 = vmul.f32 %v1234, %v1282
    %v1403 = vmul.f32 %v1234, %v1286
    %v1404 = vmul.f32 %v1234, %v1290
    %v1405 = vmul.f32 %v1234, %v1294
    %v1406 = vmul.f32 %v1234, %v1298
    %v1407 = vmul.f32 %v1234, %v1302
    %v1408 = vmul.f32 %v1234, %v1306
    %v1409 = vmul.f32 %v1234, %v1310
    %v1410 = vmul.f32 %v1234, %v1314
    %v1411 = vmul.f32 %v1238, %v1254
    %v1412 = vmul.f32 %v1238, %v1258
    %v1413 = vmul.f32 %v1238, %v1262
    %v1414 = vmul.f32 %v1238, %v1266
    %v1415 = vmul.f32 %v1238, %v1270
    %v1416 = vmul.f32 %v1238, %v1274
    %v1417 = vmul.f32 %v1238, %v1278
    %v1418 = vmul.f32 %v1238, %v1282
    %v1419 = vmul.f32 %v1238, %v1286
    %v1420 = vmul.f32 %v1238, %v1290
    %v1421 = vmul.f32 %v1238, %v1294
    %v1422 = vmul.f32 %v1238, %v1298
    %v1423 = vmul.f32 %v1238, %v1302
    %v1424 = vmul.f32 %v1238, %v1306
    %v1425 = vmul.f32 %v1238, %v1310
    %v1426 = vmul.f32 %v1238, %v1314
    %v1427 = vmul.f32 %v1242, %v1254
    %v1428 = vmul.f32 %v1242, %v1258
    %v1429 = vmul.f32 %v1242, %v1262
    %v1430 = vmul.f32 %v1242, %v1266
    %v1431 = vmul.f32 %v1242, %v1270
    %v1432 = vmul.f32 %v1242, %v1274
    %v1433 = vmul.f32 %v1242, %v1278
    %v1434 = vmul.f32 %v1242, %v1282
    %v1435 = vmul.f32 %v1242, %v1286
    %v1436 = vmul.f32 %v1242, %v1290
    %v1437 = vmul.f32 %v1242, %v1294
    %v1438 = vmul.f32 %v1242, %v1298
    %v1439 = vmul.f32 %v1242, %v1302
    %v1440 = vmul.f32 %v1242, %v1306
    %v1441 = vmul.f32 %v1242, %v1310
    %v1442 = vmul.f32 %v1242, %v1314
    %v1443 = vmul.f32 %v1246, %v1254
    %v1444 = vmul.f32 %v1246, %v1258
    %v1445 = vmul.f32 %v1246, %v1262
    %v1446 = vmul.f32 %v1246, %v1266
    %v1447 = vmul.f32 %v1246, %v1270
    %v1448 = vmul.f32 %v1246, %v1274
    %v1449 = vmul.f32 %v1246, %v1278
    %v1450 = vmul.f32 %v1246, %v1282
    %v1451 = vmul.f32 %v1246, %v1286
    %v1452 = vmul.f32 %v1246, %v1290
    %v1453 = vmul.f32 %v1246, %v1294
    %v1454 = vmul.f32 %v1246, %v1298
    %v1455 = vmul.f32 %v1246, %v1302
    %v1456 = vmul.f32 %v1246, %v1306
    %v1457 = vmul.f32 %v1246, %v1310
    %v1458 = vmul.f32 %v1246, %v1314
    %v1459 = vadd.f32 %v1087, %v1331
    %v1460 = vadd.f32 %v1088, %v1332
    %v1461 = vadd.f32 %v1089, %v1333
    %v1462 = vadd.f32 %v1090, %v1334
    %v1463 = vadd.f32 %v1091, %v1335
    %v1464 = vadd.f32 %v1092, %v1336
    %v1465 = vadd.f32 %v1093, %v1337
    %v1466 = vadd.f32 %v1094, %v1338
    %v1467 = vadd.f32 %v1095, %v1339
    %v1468 = vadd.f32 %v1096, %v1340
    %v1469 = vadd.f32 %v1097, %v1341
    %v1470 = vadd.f32 %v1098, %v1342
    %v1471 = vadd.f32 %v1099, %v1343
    %v1472 = vadd.f32 %v1100, %v1344
    %v1473 = vadd.f32 %v1101, %v1345
    %v1474 = vadd.f32 %v1102, %v1346
    %v1475 = vadd.f32 %v1103, %v1347
    %v1476 = vadd.f32 %v1104, %v1348
    %v1477 = vadd.f32 %v1105, %v1349
    %v1478 = vadd.f32 %v1106, %v1350
    %v1479 = vadd.f32 %v1107, %v1351
    %v1480 = vadd.f32 %v1108, %v1352
    %v1481 = vadd.f32 %v1109, %v1353
    %v1482 = vadd.f32 %v1110, %v1354
    %v1483 = vadd.f32 %v1111, %v1355
    %v1484 = vadd.f32 %v1112, %v1356
    %v1485 = vadd.f32 %v1113, %v1357
    %v1486 = vadd.f32 %v1114, %v1358
    %v1487 = vadd.f32 %v1115, %v1359
    %v1488 = vadd.f32 %v1116, %v1360
    %v1489 = vadd.f32 %v1117, %v1361
    %v1490 = vadd.f32 %v1118, %v1362
    %v1491 = vadd.f32 %v1119, %v1363
    %v1492 = vadd.f32 %v1120, %v1364
    %v1493 = vadd.f32 %v1121, %v1365
    %v1494 = vadd.f32 %v1122, %v1366
    %v1495 = vadd.f32 %v1123, %v1367
    %v1496 = vadd.f32 %v1124, %v1368
    %v1497 = vadd.f32 %v1125, %v1369
    %v1498 = vadd.f32 %v1126, %v1370
    %v1499 = vadd.f32 %v1127, %v1371
    %v1500 = vadd.f32 %v1128, %v1372
    %v1501 = vadd.f32 %v1129, %v1373
    %v1502 = vadd.f32 %v1130, %v1374
    %v1503 = vadd.f32 %v1131, %v1375
    %v1504 = vadd.f32 %v1132, %v1376
    %v1505 = vadd.f32 %v1133, %v1377
    %v1506 = vadd.f32 %v1134, %v1378
    %v1507 = vadd.f32 %v1135, %v1379
    %v1508 = vadd.f32 %v1136, %v1380
    %v1509 = vadd.f32 %v1137, %v1381
    %v1510 = vadd.f32 %v1138, %v1382
    %v1511 = vadd.f32 %v1139, %v1383
    %v1512 = vadd.f32 %v1140, %v1384
    %v1513 = vadd.f32 %v1141, %v1385
    %v1514 = vadd.f32 %v1142, %v1386
    %v1515 = vadd.f32 %v1143, %v1387
    %v1516 = vadd.f32 %v1144, %v1388
    %v1517 = vadd.f32 %v1145, %v1389
    %v1518 = vadd.f32 %v1146, %v1390
    %v1519 = vadd.f32 %v1147, %v1391
    %v1520 = vadd.f32 %v1148, %v1392
    %v1521 = vadd.f32 %v1149, %v1393
    %v1522 = vadd.f32 %v1150, %v1394
    %v1523 = vadd.f32 %v1151, %v1395
    %v1524 = vadd.f32 %v1152, %v1396
    %v1525 = vadd.f32 %v1153, %v1397
    %v1526 = vadd.f32 %v1154, %v1398
    %v1527 = vadd.f32 %v1155, %v1399
    %v1528 = vadd.f32 %v1156, %v1400
    %v1529 = vadd.f32 %v1157, %v1401
    %v1530 = vadd.f32 %v1158, %v1402
    %v1531 = vadd.f32 %v1159, %v1403
    %v1532 = vadd.f32 %v1160, %v1404
    %v1533 = vadd.f32 %v1161, %v1405
    %v1534 = vadd.f32 %v1162, %v1406
    %v1535 = vadd.f32 %v1163, %v1407
    %v1536 = vadd.f32 %v1164, %v1408
    %v1537 = vadd.f32 %v1165, %v1409
    %v1538 = vadd.f32 %v1166, %v1410
    %v1539 = vadd.f32 %v1167, %v1411
    %v1540 = vadd.f32 %v1168, %v1412
    %v1541 = vadd.f32 %v1169, %v1413
    %v1542 = vadd.f32 %v1170, %v1414
    %v1543 = vadd.f32 %v1171, %v1415
    %v1544 = vadd.f32 %v1172, %v1416
    %v1545 = vadd.f32 %v1173, %v1417
    %v1546 = vadd.f32 %v1174, %v1418
    %v1547 = vadd.f32 %v1175, %v1419
    %v1548 = vadd.f32 %v1176, %v1420
    %v1549 = vadd.f32 %v1177, %v1421
    %v1550 = vadd.f32 %v1178, %v1422
    %v1551 = vadd.f32 %v1179, %v1423
    %v1552 = vadd.f32 %v1180, %v1424
    %v1553 = vadd.f32 %v1181, %v1425
    %v1554 = vadd.f32 %v1182, %v1426
    %v1555 = vadd.f32 %v1183, %v1427
    %v1556 = vadd.f32 %v1184, %v1428
    %v1557 = vadd.f32 %v1185, %v1429
    %v1558 = vadd.f32 %v1186, %v1430
    %v1559 = vadd.f32 %v1187, %v1431
    %v1560 = vadd.f32 %v1188, %v1432
    %v1561 = vadd.f32 %v1189, %v1433
    %v1562 = vadd.f32 %v1190, %v1434
    %v1563 = vadd.f32 %v1191, %v1435
    %v1564 = vadd.f32 %v1192, %v1436
    %v1565 = vadd.f32 %v1193, %v1437
    %v1566 = vadd.f32 %v1194, %v1438
    %v1567 = vadd.f32 %v1195, %v1439
    %v1568 = vadd.f32 %v1196, %v1440
    %v1569 = vadd.f32 %v1197, %v1441
    %v1570 = vadd.f32 %v1198, %v1442
    %v1571 = vadd.f32 %v1199, %v1443
    %v1572 = vadd.f32 %v1200, %v1444
    %v1573 = vadd.f32 %v1201, %v1445
    %v1574 = vadd.f32 %v1202, %v1446
    %v1575 = vadd.f32 %v1203, %v1447
    %v1576 = vadd.f32 %v1204, %v1448
    %v1577 = vadd.f32 %v1205, %v1449
    %v1578 = vadd.f32 %v1206, %v1450
    %v1579 = vadd.f32 %v1207, %v1451
    %v1580 = vadd.f32 %v1208, %v1452
    %v1581 = vadd.f32 %v1209, %v1453
    %v1582 = vadd.f32 %v1210, %v1454
    %v1583 = vadd.f32 %v1211, %v1455
    %v1584 = vadd.f32 %v1212, %v1456
    %v1585 = vadd.f32 %v1213, %v1457
    %v1586 = vadd.f32 %v1214, %v1458
    %v1587 = vpack.c.bf16 %v1460, %v1459
    %v1588 = vpack.c.bf16 %v1462, %v1461
    %v1589 = vpack.c.bf16 %v1464, %v1463
    %v1590 = vpack.c.bf16 %v1466, %v1465
    %v1591 = vpack.c.bf16 %v1468, %v1467
    %v1592 = vpack.c.bf16 %v1470, %v1469
    %v1593 = vpack.c.bf16 %v1472, %v1471
    %v1594 = vpack.c.bf16 %v1474, %v1473
    %v1595 = vpack.c.bf16 %v1476, %v1475
    %v1596 = vpack.c.bf16 %v1478, %v1477
    %v1597 = vpack.c.bf16 %v1480, %v1479
    %v1598 = vpack.c.bf16 %v1482, %v1481
    %v1599 = vpack.c.bf16 %v1484, %v1483
    %v1600 = vpack.c.bf16 %v1486, %v1485
    %v1601 = vpack.c.bf16 %v1488, %v1487
    %v1602 = vpack.c.bf16 %v1490, %v1489
    %v1603 = vpack.c.bf16 %v1492, %v1491
    %v1604 = vpack.c.bf16 %v1494, %v1493
    %v1605 = vpack.c.bf16 %v1496, %v1495
    %v1606 = vpack.c.bf16 %v1498, %v1497
    %v1607 = vpack.c.bf16 %v1500, %v1499
    %v1608 = vpack.c.bf16 %v1502, %v1501
    %v1609 = vpack.c.bf16 %v1504, %v1503
    %v1610 = vpack.c.bf16 %v1506, %v1505
    %v1611 = vpack.c.bf16 %v1508, %v1507
    %v1612 = vpack.c.bf16 %v1510, %v1509
    %v1613 = vpack.c.bf16 %v1512, %v1511
    %v1614 = vpack.c.bf16 %v1514, %v1513
    %v1615 = vpack.c.bf16 %v1516, %v1515
    %v1616 = vpack.c.bf16 %v1518, %v1517
    %v1617 = vpack.c.bf16 %v1520, %v1519
    %v1618 = vpack.c.bf16 %v1522, %v1521
    %v1619 = vpack.c.bf16 %v1524, %v1523
    %v1620 = vpack.c.bf16 %v1526, %v1525
    %v1621 = vpack.c.bf16 %v1528, %v1527
    %v1622 = vpack.c.bf16 %v1530, %v1529
    %v1623 = vpack.c.bf16 %v1532, %v1531
    %v1624 = vpack.c.bf16 %v1534, %v1533
    %v1625 = vpack.c.bf16 %v1536, %v1535
    %v1626 = vpack.c.bf16 %v1538, %v1537
    %v1627 = vpack.c.bf16 %v1540, %v1539
    %v1628 = vpack.c.bf16 %v1542, %v1541
    %v1629 = vpack.c.bf16 %v1544, %v1543
    %v1630 = vpack.c.bf16 %v1546, %v1545
    %v1631 = vpack.c.bf16 %v1548, %v1547
    %v1632 = vpack.c.bf16 %v1550, %v1549
    %v1633 = vpack.c.bf16 %v1552, %v1551
    %v1634 = vpack.c.bf16 %v1554, %v1553
    %v1635 = vpack.c.bf16 %v1556, %v1555
    %v1636 = vpack.c.bf16 %v1558, %v1557
    %v1637 = vpack.c.bf16 %v1560, %v1559
    %v1638 = vpack.c.bf16 %v1562, %v1561
    %v1639 = vpack.c.bf16 %v1564, %v1563
    %v1640 = vpack.c.bf16 %v1566, %v1565
    %v1641 = vpack.c.bf16 %v1568, %v1567
    %v1642 = vpack.c.bf16 %v1570, %v1569
    %v1643 = vpack.c.bf16 %v1572, %v1571
    %v1644 = vpack.c.bf16 %v1574, %v1573
    %v1645 = vpack.c.bf16 %v1576, %v1575
    %v1646 = vpack.c.bf16 %v1578, %v1577
    %v1647 = vpack.c.bf16 %v1580, %v1579
    %v1648 = vpack.c.bf16 %v1582, %v1581
    %v1649 = vpack.c.bf16 %v1584, %v1583
    %v1650 = vpack.c.bf16 %v1586, %v1585
    %v1651 = vld [vmem:[#allocation7] sm:$0xf]
    %v1652 = vld [vmem:[#allocation7 + $0x4] sm:$0xf]
    %v1653 = vld [vmem:[#allocation7 + $0x8] sm:$0xf]
    %v1654 = vld [vmem:[#allocation7 + $0xc] sm:$0xf]
    %v1655 = vld [vmem:[#allocation7 + $0x10] sm:$0xf]
    %v1656 = vld [vmem:[#allocation7 + $0x14] sm:$0xf]
    %v1657 = vld [vmem:[#allocation7 + $0x18] sm:$0xf]
    %v1658 = vld [vmem:[#allocation7 + $0x1c] sm:$0xf]
    %v1659 = vld [vmem:[#allocation7 + $0x20] sm:$0xf]
    %v1660 = vld [vmem:[#allocation7 + $0x24] sm:$0xf]
    %v1661 = vld [vmem:[#allocation7 + $0x28] sm:$0xf]
    %v1662 = vld [vmem:[#allocation7 + $0x2c] sm:$0xf]
    %v1663 = vld [vmem:[#allocation7 + $0x30] sm:$0xf]
    %v1664 = vld [vmem:[#allocation7 + $0x34] sm:$0xf]
    %v1665 = vld [vmem:[#allocation7 + $0x38] sm:$0xf]
    %v1666 = vld [vmem:[#allocation7 + $0x3c] sm:$0xf]
    %v1667 = vld [vmem:[%s3] sm:$0x1]
    %v1669 = vlaneseq
    %v1670 = vshrl.u32 %v1669, 7
    %v1671 = vsub.s32 0, %v1670
    %v1672 = vrot.slane %v1667, %v1671
    %v1738 = vunpack.c.l.b16 %v1587
    %v1739 = vunpack.c.h.b16 %v1587
    %v1740 = vunpack.c.l.b16 %v1588
    %v1741 = vunpack.c.h.b16 %v1588
    %v1742 = vunpack.c.l.b16 %v1589
    %v1743 = vunpack.c.h.b16 %v1589
    %v1744 = vunpack.c.l.b16 %v1590
    %v1745 = vunpack.c.h.b16 %v1590
    %v1746 = vunpack.c.l.b16 %v1591
    %v1747 = vunpack.c.h.b16 %v1591
    %v1748 = vunpack.c.l.b16 %v1592
    %v1749 = vunpack.c.h.b16 %v1592
    %v1750 = vunpack.c.l.b16 %v1593
    %v1751 = vunpack.c.h.b16 %v1593
    %v1752 = vunpack.c.l.b16 %v1594
    %v1753 = vunpack.c.h.b16 %v1594
    %v1754 = vunpack.c.l.b16 %v1595
    %v1755 = vunpack.c.h.b16 %v1595
    %v1756 = vunpack.c.l.b16 %v1596
    %v1757 = vunpack.c.h.b16 %v1596
    %v1758 = vunpack.c.l.b16 %v1597
    %v1759 = vunpack.c.h.b16 %v1597
    %v1760 = vunpack.c.l.b16 %v1598
    %v1761 = vunpack.c.h.b16 %v1598
    %v1762 = vunpack.c.l.b16 %v1599
    %v1763 = vunpack.c.h.b16 %v1599
    %v1764 = vunpack.c.l.b16 %v1600
    %v1765 = vunpack.c.h.b16 %v1600
    %v1766 = vunpack.c.l.b16 %v1601
    %v1767 = vunpack.c.h.b16 %v1601
    %v1768 = vunpack.c.l.b16 %v1602
    %v1769 = vunpack.c.h.b16 %v1602
    %v1770 = vunpack.c.l.b16 %v1603
    %v1771 = vunpack.c.h.b16 %v1603
    %v1772 = vunpack.c.l.b16 %v1604
    %v1773 = vunpack.c.h.b16 %v1604
    %v1774 = vunpack.c.l.b16 %v1605
    %v1775 = vunpack.c.h.b16 %v1605
    %v1776 = vunpack.c.l.b16 %v1606
    %v1777 = vunpack.c.h.b16 %v1606
    %v1778 = vunpack.c.l.b16 %v1607
    %v1779 = vunpack.c.h.b16 %v1607
    %v1780 = vunpack.c.l.b16 %v1608
    %v1781 = vunpack.c.h.b16 %v1608
    %v1782 = vunpack.c.l.b16 %v1609
    %v1783 = vunpack.c.h.b16 %v1609
    %v1784 = vunpack.c.l.b16 %v1610
    %v1785 = vunpack.c.h.b16 %v1610
    %v1786 = vunpack.c.l.b16 %v1611
    %v1787 = vunpack.c.h.b16 %v1611
    %v1788 = vunpack.c.l.b16 %v1612
    %v1789 = vunpack.c.h.b16 %v1612
    %v1790 = vunpack.c.l.b16 %v1613
    %v1791 = vunpack.c.h.b16 %v1613
    %v1792 = vunpack.c.l.b16 %v1614
    %v1793 = vunpack.c.h.b16 %v1614
    %v1794 = vunpack.c.l.b16 %v1615
    %v1795 = vunpack.c.h.b16 %v1615
    %v1796 = vunpack.c.l.b16 %v1616
    %v1797 = vunpack.c.h.b16 %v1616
    %v1798 = vunpack.c.l.b16 %v1617
    %v1799 = vunpack.c.h.b16 %v1617
    %v1800 = vunpack.c.l.b16 %v1618
    %v1801 = vunpack.c.h.b16 %v1618
    %v1802 = vunpack.c.l.b16 %v1619
    %v1803 = vunpack.c.h.b16 %v1619
    %v1804 = vunpack.c.l.b16 %v1620
    %v1805 = vunpack.c.h.b16 %v1620
    %v1806 = vunpack.c.l.b16 %v1621
    %v1807 = vunpack.c.h.b16 %v1621
    %v1808 = vunpack.c.l.b16 %v1622
    %v1809 = vunpack.c.h.b16 %v1622
    %v1810 = vunpack.c.l.b16 %v1623
    %v1811 = vunpack.c.h.b16 %v1623
    %v1812 = vunpack.c.l.b16 %v1624
    %v1813 = vunpack.c.h.b16 %v1624
    %v1814 = vunpack.c.l.b16 %v1625
    %v1815 = vunpack.c.h.b16 %v1625
    %v1816 = vunpack.c.l.b16 %v1626
    %v1817 = vunpack.c.h.b16 %v1626
    %v1818 = vunpack.c.l.b16 %v1627
    %v1819 = vunpack.c.h.b16 %v1627
    %v1820 = vunpack.c.l.b16 %v1628
    %v1821 = vunpack.c.h.b16 %v1628
    %v1822 = vunpack.c.l.b16 %v1629
    %v1823 = vunpack.c.h.b16 %v1629
    %v1824 = vunpack.c.l.b16 %v1630
    %v1825 = vunpack.c.h.b16 %v1630
    %v1826 = vunpack.c.l.b16 %v1631
    %v1827 = vunpack.c.h.b16 %v1631
    %v1828 = vunpack.c.l.b16 %v1632
    %v1829 = vunpack.c.h.b16 %v1632
    %v1830 = vunpack.c.l.b16 %v1633
    %v1831 = vunpack.c.h.b16 %v1633
    %v1832 = vunpack.c.l.b16 %v1634
    %v1833 = vunpack.c.h.b16 %v1634
    %v1834 = vunpack.c.l.b16 %v1635
    %v1835 = vunpack.c.h.b16 %v1635
    %v1836 = vunpack.c.l.b16 %v1636
    %v1837 = vunpack.c.h.b16 %v1636
    %v1838 = vunpack.c.l.b16 %v1637
    %v1839 = vunpack.c.h.b16 %v1637
    %v1840 = vunpack.c.l.b16 %v1638
    %v1841 = vunpack.c.h.b16 %v1638
    %v1842 = vunpack.c.l.b16 %v1639
    %v1843 = vunpack.c.h.b16 %v1639
    %v1844 = vunpack.c.l.b16 %v1640
    %v1845 = vunpack.c.h.b16 %v1640
    %v1846 = vunpack.c.l.b16 %v1641
    %v1847 = vunpack.c.h.b16 %v1641
    %v1848 = vunpack.c.l.b16 %v1642
    %v1849 = vunpack.c.h.b16 %v1642
    %v1850 = vunpack.c.l.b16 %v1643
    %v1851 = vunpack.c.h.b16 %v1643
    %v1852 = vunpack.c.l.b16 %v1644
    %v1853 = vunpack.c.h.b16 %v1644
    %v1854 = vunpack.c.l.b16 %v1645
    %v1855 = vunpack.c.h.b16 %v1645
    %v1856 = vunpack.c.l.b16 %v1646
    %v1857 = vunpack.c.h.b16 %v1646
    %v1858 = vunpack.c.l.b16 %v1647
    %v1859 = vunpack.c.h.b16 %v1647
    %v1860 = vunpack.c.l.b16 %v1648
    %v1861 = vunpack.c.h.b16 %v1648
    %v1862 = vunpack.c.l.b16 %v1649
    %v1863 = vunpack.c.h.b16 %v1649
    %v1864 = vunpack.c.l.b16 %v1650
    %v1865 = vunpack.c.h.b16 %v1650
    %1866 = vset.pattern.permute.xlu0 0
    %1867 = vperm.xlu0 %1866, %v1738
    %v1868 = vpop.permute.xlu0 %1867
    %1869 = vset.pattern.permute.xlu0 0
    %1870 = vperm.xlu0 %1869, %v1739
    %v1871 = vpop.permute.xlu0 %1870
    %1872 = vset.pattern.permute.xlu0 0
    %1873 = vperm.xlu0 %1872, %v1740
    %v1874 = vpop.permute.xlu0 %1873
    %1875 = vset.pattern.permute.xlu0 0
    %1876 = vperm.xlu0 %1875, %v1741
    %v1877 = vpop.permute.xlu0 %1876
    %1878 = vset.pattern.permute.xlu0 0
    %1879 = vperm.xlu0 %1878, %v1742
    %v1880 = vpop.permute.xlu0 %1879
    %1881 = vset.pattern.permute.xlu0 0
    %1882 = vperm.xlu0 %1881, %v1743
    %v1883 = vpop.permute.xlu0 %1882
    %1884 = vset.pattern.permute.xlu0 0
    %1885 = vperm.xlu0 %1884, %v1744
    %v1886 = vpop.permute.xlu0 %1885
    %1887 = vset.pattern.permute.xlu0 0
    %1888 = vperm.xlu0 %1887, %v1745
    %v1889 = vpop.permute.xlu0 %1888
    %1890 = vset.pattern.permute.xlu0 0
    %1891 = vperm.xlu0 %1890, %v1746
    %v1892 = vpop.permute.xlu0 %1891
    %1893 = vset.pattern.permute.xlu0 0
    %1894 = vperm.xlu0 %1893, %v1747
    %v1895 = vpop.permute.xlu0 %1894
    %1896 = vset.pattern.permute.xlu0 0
    %1897 = vperm.xlu0 %1896, %v1748
    %v1898 = vpop.permute.xlu0 %1897
    %1899 = vset.pattern.permute.xlu0 0
    %1900 = vperm.xlu0 %1899, %v1749
    %v1901 = vpop.permute.xlu0 %1900
    %1902 = vset.pattern.permute.xlu0 0
    %1903 = vperm.xlu0 %1902, %v1750
    %v1904 = vpop.permute.xlu0 %1903
    %1905 = vset.pattern.permute.xlu0 0
    %1906 = vperm.xlu0 %1905, %v1751
    %v1907 = vpop.permute.xlu0 %1906
    %1908 = vset.pattern.permute.xlu0 0
    %1909 = vperm.xlu0 %1908, %v1752
    %v1910 = vpop.permute.xlu0 %1909
    %1911 = vset.pattern.permute.xlu0 0
    %1912 = vperm.xlu0 %1911, %v1753
    %v1913 = vpop.permute.xlu0 %1912
    %1914 = vset.pattern.permute.xlu0 0
    %1915 = vperm.xlu0 %1914, %v1754
    %v1916 = vpop.permute.xlu0 %1915
    %1917 = vset.pattern.permute.xlu0 0
    %1918 = vperm.xlu0 %1917, %v1755
    %v1919 = vpop.permute.xlu0 %1918
    %1920 = vset.pattern.permute.xlu0 0
    %1921 = vperm.xlu0 %1920, %v1756
    %v1922 = vpop.permute.xlu0 %1921
    %1923 = vset.pattern.permute.xlu0 0
    %1924 = vperm.xlu0 %1923, %v1757
    %v1925 = vpop.permute.xlu0 %1924
    %1926 = vset.pattern.permute.xlu0 0
    %1927 = vperm.xlu0 %1926, %v1758
    %v1928 = vpop.permute.xlu0 %1927
    %1929 = vset.pattern.permute.xlu0 0
    %1930 = vperm.xlu0 %1929, %v1759
    %v1931 = vpop.permute.xlu0 %1930
    %1932 = vset.pattern.permute.xlu0 0
    %1933 = vperm.xlu0 %1932, %v1760
    %v1934 = vpop.permute.xlu0 %1933
    %1935 = vset.pattern.permute.xlu0 0
    %1936 = vperm.xlu0 %1935, %v1761
    %v1937 = vpop.permute.xlu0 %1936
    %1938 = vset.pattern.permute.xlu0 0
    %1939 = vperm.xlu0 %1938, %v1762
    %v1940 = vpop.permute.xlu0 %1939
    %1941 = vset.pattern.permute.xlu0 0
    %1942 = vperm.xlu0 %1941, %v1763
    %v1943 = vpop.permute.xlu0 %1942
    %1944 = vset.pattern.permute.xlu0 0
    %1945 = vperm.xlu0 %1944, %v1764
    %v1946 = vpop.permute.xlu0 %1945
    %1947 = vset.pattern.permute.xlu0 0
    %1948 = vperm.xlu0 %1947, %v1765
    %v1949 = vpop.permute.xlu0 %1948
    %1950 = vset.pattern.permute.xlu0 0
    %1951 = vperm.xlu0 %1950, %v1766
    %v1952 = vpop.permute.xlu0 %1951
    %1953 = vset.pattern.permute.xlu0 0
    %1954 = vperm.xlu0 %1953, %v1767
    %v1955 = vpop.permute.xlu0 %1954
    %1956 = vset.pattern.permute.xlu0 0
    %1957 = vperm.xlu0 %1956, %v1768
    %v1958 = vpop.permute.xlu0 %1957
    %1959 = vset.pattern.permute.xlu0 0
    %1960 = vperm.xlu0 %1959, %v1769
    %v1961 = vpop.permute.xlu0 %1960
    %1962 = vset.pattern.permute.xlu0 0
    %1963 = vperm.xlu0 %1962, %v1770
    %v1964 = vpop.permute.xlu0 %1963
    %1965 = vset.pattern.permute.xlu0 0
    %1966 = vperm.xlu0 %1965, %v1771
    %v1967 = vpop.permute.xlu0 %1966
    %1968 = vset.pattern.permute.xlu0 0
    %1969 = vperm.xlu0 %1968, %v1772
    %v1970 = vpop.permute.xlu0 %1969
    %1971 = vset.pattern.permute.xlu0 0
    %1972 = vperm.xlu0 %1971, %v1773
    %v1973 = vpop.permute.xlu0 %1972
    %1974 = vset.pattern.permute.xlu0 0
    %1975 = vperm.xlu0 %1974, %v1774
    %v1976 = vpop.permute.xlu0 %1975
    %1977 = vset.pattern.permute.xlu0 0
    %1978 = vperm.xlu0 %1977, %v1775
    %v1979 = vpop.permute.xlu0 %1978
    %1980 = vset.pattern.permute.xlu0 0
    %1981 = vperm.xlu0 %1980, %v1776
    %v1982 = vpop.permute.xlu0 %1981
    %1983 = vset.pattern.permute.xlu0 0
    %1984 = vperm.xlu0 %1983, %v1777
    %v1985 = vpop.permute.xlu0 %1984
    %1986 = vset.pattern.permute.xlu0 0
    %1987 = vperm.xlu0 %1986, %v1778
    %v1988 = vpop.permute.xlu0 %1987
    %1989 = vset.pattern.permute.xlu0 0
    %1990 = vperm.xlu0 %1989, %v1779
    %v1991 = vpop.permute.xlu0 %1990
    %1992 = vset.pattern.permute.xlu0 0
    %1993 = vperm.xlu0 %1992, %v1780
    %v1994 = vpop.permute.xlu0 %1993
    %1995 = vset.pattern.permute.xlu0 0
    %1996 = vperm.xlu0 %1995, %v1781
    %v1997 = vpop.permute.xlu0 %1996
    %1998 = vset.pattern.permute.xlu0 0
    %1999 = vperm.xlu0 %1998, %v1782
    %v2000 = vpop.permute.xlu0 %1999
    %2001 = vset.pattern.permute.xlu0 0
    %2002 = vperm.xlu0 %2001, %v1783
    %v2003 = vpop.permute.xlu0 %2002
    %2004 = vset.pattern.permute.xlu0 0
    %2005 = vperm.xlu0 %2004, %v1784
    %v2006 = vpop.permute.xlu0 %2005
    %2007 = vset.pattern.permute.xlu0 0
    %2008 = vperm.xlu0 %2007, %v1785
    %v2009 = vpop.permute.xlu0 %2008
    %2010 = vset.pattern.permute.xlu0 0
    %2011 = vperm.xlu0 %2010, %v1786
    %v2012 = vpop.permute.xlu0 %2011
    %2013 = vset.pattern.permute.xlu0 0
    %2014 = vperm.xlu0 %2013, %v1787
    %v2015 = vpop.permute.xlu0 %2014
    %2016 = vset.pattern.permute.xlu0 0
    %2017 = vperm.xlu0 %2016, %v1788
    %v2018 = vpop.permute.xlu0 %2017
    %2019 = vset.pattern.permute.xlu0 0
    %2020 = vperm.xlu0 %2019, %v1789
    %v2021 = vpop.permute.xlu0 %2020
    %2022 = vset.pattern.permute.xlu0 0
    %2023 = vperm.xlu0 %2022, %v1790
    %v2024 = vpop.permute.xlu0 %2023
    %2025 = vset.pattern.permute.xlu0 0
    %2026 = vperm.xlu0 %2025, %v1791
    %v2027 = vpop.permute.xlu0 %2026
    %2028 = vset.pattern.permute.xlu0 0
    %2029 = vperm.xlu0 %2028, %v1792
    %v2030 = vpop.permute.xlu0 %2029
    %2031 = vset.pattern.permute.xlu0 0
    %2032 = vperm.xlu0 %2031, %v1793
    %v2033 = vpop.permute.xlu0 %2032
    %2034 = vset.pattern.permute.xlu0 0
    %2035 = vperm.xlu0 %2034, %v1794
    %v2036 = vpop.permute.xlu0 %2035
    %2037 = vset.pattern.permute.xlu0 0
    %2038 = vperm.xlu0 %2037, %v1795
    %v2039 = vpop.permute.xlu0 %2038
    %2040 = vset.pattern.permute.xlu0 0
    %2041 = vperm.xlu0 %2040, %v1796
    %v2042 = vpop.permute.xlu0 %2041
    %2043 = vset.pattern.permute.xlu0 0
    %2044 = vperm.xlu0 %2043, %v1797
    %v2045 = vpop.permute.xlu0 %2044
    %2046 = vset.pattern.permute.xlu0 0
    %2047 = vperm.xlu0 %2046, %v1798
    %v2048 = vpop.permute.xlu0 %2047
    %2049 = vset.pattern.permute.xlu0 0
    %2050 = vperm.xlu0 %2049, %v1799
    %v2051 = vpop.permute.xlu0 %2050
    %2052 = vset.pattern.permute.xlu0 0
    %2053 = vperm.xlu0 %2052, %v1800
    %v2054 = vpop.permute.xlu0 %2053
    %2055 = vset.pattern.permute.xlu0 0
    %2056 = vperm.xlu0 %2055, %v1801
    %v2057 = vpop.permute.xlu0 %2056
    %2058 = vset.pattern.permute.xlu0 0
    %2059 = vperm.xlu0 %2058, %v1802
    %v2060 = vpop.permute.xlu0 %2059
    %2061 = vset.pattern.permute.xlu0 0
    %2062 = vperm.xlu0 %2061, %v1803
    %v2063 = vpop.permute.xlu0 %2062
    %2064 = vset.pattern.permute.xlu0 0
    %2065 = vperm.xlu0 %2064, %v1804
    %v2066 = vpop.permute.xlu0 %2065
    %2067 = vset.pattern.permute.xlu0 0
    %2068 = vperm.xlu0 %2067, %v1805
    %v2069 = vpop.permute.xlu0 %2068
    %2070 = vset.pattern.permute.xlu0 0
    %2071 = vperm.xlu0 %2070, %v1806
    %v2072 = vpop.permute.xlu0 %2071
    %2073 = vset.pattern.permute.xlu0 0
    %2074 = vperm.xlu0 %2073, %v1807
    %v2075 = vpop.permute.xlu0 %2074
    %2076 = vset.pattern.permute.xlu0 0
    %2077 = vperm.xlu0 %2076, %v1808
    %v2078 = vpop.permute.xlu0 %2077
    %2079 = vset.pattern.permute.xlu0 0
    %2080 = vperm.xlu0 %2079, %v1809
    %v2081 = vpop.permute.xlu0 %2080
    %2082 = vset.pattern.permute.xlu0 0
    %2083 = vperm.xlu0 %2082, %v1810
    %v2084 = vpop.permute.xlu0 %2083
    %2085 = vset.pattern.permute.xlu0 0
    %2086 = vperm.xlu0 %2085, %v1811
    %v2087 = vpop.permute.xlu0 %2086
    %2088 = vset.pattern.permute.xlu0 0
    %2089 = vperm.xlu0 %2088, %v1812
    %v2090 = vpop.permute.xlu0 %2089
    %2091 = vset.pattern.permute.xlu0 0
    %2092 = vperm.xlu0 %2091, %v1813
    %v2093 = vpop.permute.xlu0 %2092
    %2094 = vset.pattern.permute.xlu0 0
    %2095 = vperm.xlu0 %2094, %v1814
    %v2096 = vpop.permute.xlu0 %2095
    %2097 = vset.pattern.permute.xlu0 0
    %2098 = vperm.xlu0 %2097, %v1815
    %v2099 = vpop.permute.xlu0 %2098
    %2100 = vset.pattern.permute.xlu0 0
    %2101 = vperm.xlu0 %2100, %v1816
    %v2102 = vpop.permute.xlu0 %2101
    %2103 = vset.pattern.permute.xlu0 0
    %2104 = vperm.xlu0 %2103, %v1817
    %v2105 = vpop.permute.xlu0 %2104
    %2106 = vset.pattern.permute.xlu0 0
    %2107 = vperm.xlu0 %2106, %v1818
    %v2108 = vpop.permute.xlu0 %2107
    %2109 = vset.pattern.permute.xlu0 0
    %2110 = vperm.xlu0 %2109, %v1819
    %v2111 = vpop.permute.xlu0 %2110
    %2112 = vset.pattern.permute.xlu0 0
    %2113 = vperm.xlu0 %2112, %v1820
    %v2114 = vpop.permute.xlu0 %2113
    %2115 = vset.pattern.permute.xlu0 0
    %2116 = vperm.xlu0 %2115, %v1821
    %v2117 = vpop.permute.xlu0 %2116
    %2118 = vset.pattern.permute.xlu0 0
    %2119 = vperm.xlu0 %2118, %v1822
    %v2120 = vpop.permute.xlu0 %2119
    %2121 = vset.pattern.permute.xlu0 0
    %2122 = vperm.xlu0 %2121, %v1823
    %v2123 = vpop.permute.xlu0 %2122
    %2124 = vset.pattern.permute.xlu0 0
    %2125 = vperm.xlu0 %2124, %v1824
    %v2126 = vpop.permute.xlu0 %2125
    %2127 = vset.pattern.permute.xlu0 0
    %2128 = vperm.xlu0 %2127, %v1825
    %v2129 = vpop.permute.xlu0 %2128
    %2130 = vset.pattern.permute.xlu0 0
    %2131 = vperm.xlu0 %2130, %v1826
    %v2132 = vpop.permute.xlu0 %2131
    %2133 = vset.pattern.permute.xlu0 0
    %2134 = vperm.xlu0 %2133, %v1827
    %v2135 = vpop.permute.xlu0 %2134
    %2136 = vset.pattern.permute.xlu0 0
    %2137 = vperm.xlu0 %2136, %v1828
    %v2138 = vpop.permute.xlu0 %2137
    %2139 = vset.pattern.permute.xlu0 0
    %2140 = vperm.xlu0 %2139, %v1829
    %v2141 = vpop.permute.xlu0 %2140
    %2142 = vset.pattern.permute.xlu0 0
    %2143 = vperm.xlu0 %2142, %v1830
    %v2144 = vpop.permute.xlu0 %2143
    %2145 = vset.pattern.permute.xlu0 0
    %2146 = vperm.xlu0 %2145, %v1831
    %v2147 = vpop.permute.xlu0 %2146
    %2148 = vset.pattern.permute.xlu0 0
    %2149 = vperm.xlu0 %2148, %v1832
    %v2150 = vpop.permute.xlu0 %2149
    %2151 = vset.pattern.permute.xlu0 0
    %2152 = vperm.xlu0 %2151, %v1833
    %v2153 = vpop.permute.xlu0 %2152
    %2154 = vset.pattern.permute.xlu0 0
    %2155 = vperm.xlu0 %2154, %v1834
    %v2156 = vpop.permute.xlu0 %2155
    %2157 = vset.pattern.permute.xlu0 0
    %2158 = vperm.xlu0 %2157, %v1835
    %v2159 = vpop.permute.xlu0 %2158
    %2160 = vset.pattern.permute.xlu0 0
    %2161 = vperm.xlu0 %2160, %v1836
    %v2162 = vpop.permute.xlu0 %2161
    %2163 = vset.pattern.permute.xlu0 0
    %2164 = vperm.xlu0 %2163, %v1837
    %v2165 = vpop.permute.xlu0 %2164
    %2166 = vset.pattern.permute.xlu0 0
    %2167 = vperm.xlu0 %2166, %v1838
    %v2168 = vpop.permute.xlu0 %2167
    %2169 = vset.pattern.permute.xlu0 0
    %2170 = vperm.xlu0 %2169, %v1839
    %v2171 = vpop.permute.xlu0 %2170
    %2172 = vset.pattern.permute.xlu0 0
    %2173 = vperm.xlu0 %2172, %v1840
    %v2174 = vpop.permute.xlu0 %2173
    %2175 = vset.pattern.permute.xlu0 0
    %2176 = vperm.xlu0 %2175, %v1841
    %v2177 = vpop.permute.xlu0 %2176
    %2178 = vset.pattern.permute.xlu0 0
    %2179 = vperm.xlu0 %2178, %v1842
    %v2180 = vpop.permute.xlu0 %2179
    %2181 = vset.pattern.permute.xlu0 0
    %2182 = vperm.xlu0 %2181, %v1843
    %v2183 = vpop.permute.xlu0 %2182
    %2184 = vset.pattern.permute.xlu0 0
    %2185 = vperm.xlu0 %2184, %v1844
    %v2186 = vpop.permute.xlu0 %2185
    %2187 = vset.pattern.permute.xlu0 0
    %2188 = vperm.xlu0 %2187, %v1845
    %v2189 = vpop.permute.xlu0 %2188
    %2190 = vset.pattern.permute.xlu0 0
    %2191 = vperm.xlu0 %2190, %v1846
    %v2192 = vpop.permute.xlu0 %2191
    %2193 = vset.pattern.permute.xlu0 0
    %2194 = vperm.xlu0 %2193, %v1847
    %v2195 = vpop.permute.xlu0 %2194
    %2196 = vset.pattern.permute.xlu0 0
    %2197 = vperm.xlu0 %2196, %v1848
    %v2198 = vpop.permute.xlu0 %2197
    %2199 = vset.pattern.permute.xlu0 0
    %2200 = vperm.xlu0 %2199, %v1849
    %v2201 = vpop.permute.xlu0 %2200
    %2202 = vset.pattern.permute.xlu0 0
    %2203 = vperm.xlu0 %2202, %v1850
    %v2204 = vpop.permute.xlu0 %2203
    %2205 = vset.pattern.permute.xlu0 0
    %2206 = vperm.xlu0 %2205, %v1851
    %v2207 = vpop.permute.xlu0 %2206
    %2208 = vset.pattern.permute.xlu0 0
    %2209 = vperm.xlu0 %2208, %v1852
    %v2210 = vpop.permute.xlu0 %2209
    %2211 = vset.pattern.permute.xlu0 0
    %2212 = vperm.xlu0 %2211, %v1853
    %v2213 = vpop.permute.xlu0 %2212
    %2214 = vset.pattern.permute.xlu0 0
    %2215 = vperm.xlu0 %2214, %v1854
    %v2216 = vpop.permute.xlu0 %2215
    %2217 = vset.pattern.permute.xlu0 0
    %2218 = vperm.xlu0 %2217, %v1855
    %v2219 = vpop.permute.xlu0 %2218
    %2220 = vset.pattern.permute.xlu0 0
    %2221 = vperm.xlu0 %2220, %v1856
    %v2222 = vpop.permute.xlu0 %2221
    %2223 = vset.pattern.permute.xlu0 0
    %2224 = vperm.xlu0 %2223, %v1857
    %v2225 = vpop.permute.xlu0 %2224
    %2226 = vset.pattern.permute.xlu0 0
    %2227 = vperm.xlu0 %2226, %v1858
    %v2228 = vpop.permute.xlu0 %2227
    %2229 = vset.pattern.permute.xlu0 0
    %2230 = vperm.xlu0 %2229, %v1859
    %v2231 = vpop.permute.xlu0 %2230
    %2232 = vset.pattern.permute.xlu0 0
    %2233 = vperm.xlu0 %2232, %v1860
    %v2234 = vpop.permute.xlu0 %2233
    %2235 = vset.pattern.permute.xlu0 0
    %2236 = vperm.xlu0 %2235, %v1861
    %v2237 = vpop.permute.xlu0 %2236
    %2238 = vset.pattern.permute.xlu0 0
    %2239 = vperm.xlu0 %2238, %v1862
    %v2240 = vpop.permute.xlu0 %2239
    %2241 = vset.pattern.permute.xlu0 0
    %2242 = vperm.xlu0 %2241, %v1863
    %v2243 = vpop.permute.xlu0 %2242
    %2244 = vset.pattern.permute.xlu0 0
    %2245 = vperm.xlu0 %2244, %v1864
    %v2246 = vpop.permute.xlu0 %2245
    %2247 = vset.pattern.permute.xlu0 0
    %2248 = vperm.xlu0 %2247, %v1865
    %v2249 = vpop.permute.xlu0 %2248
    %v2250 = vlaneseq
    %v2251 = vshrl.u32 %v2250, 7
    %v2252 = vsub.s32 %v320, %v2251
    %v2253 = vrot.slane %v1868, %v2252
    %v2254 = vlaneseq
    %v2255 = vshrl.u32 %v2254, 7
    %v2256 = vsub.s32 %v325, %v2255
    %v2257 = vrot.slane %v1871, %v2256
    %v2258 = vsel %vm330, %v2257, %v2253
    %v2259 = vadd.s32 %v320, 4294967280
    %v2260 = vlaneseq
    %v2261 = vshrl.u32 %v2260, 7
    %v2262 = vsub.s32 %v2259, %v2261
    %v2263 = vrot.slane %v1874, %v2262
    %vm2264 = vcmask 195712
    %v2265 = vsel %vm2264, %v2263, %v2258
    %v2266 = vadd.s32 %v320, 4294967272
    %v2267 = vlaneseq
    %v2268 = vshrl.u32 %v2267, 7
    %v2269 = vsub.s32 %v2266, %v2268
    %v2270 = vrot.slane %v1877, %v2269
    %vm2271 = vcmask 261312
    %v2272 = vsel %vm2271, %v2270, %v2265
    %v2273 = vadd.s32 %v320, 4294967264
    %v2274 = vlaneseq
    %v2275 = vshrl.u32 %v2274, 7
    %v2276 = vsub.s32 %v2273, %v2275
    %v2277 = vrot.slane %v1880, %v2276
    %vm2278 = vcmask 326912
    %v2279 = vsel %vm2278, %v2277, %v2272
    %v2280 = vadd.s32 %v320, 4294967256
    %v2281 = vlaneseq
    %v2282 = vshrl.u32 %v2281, 7
    %v2283 = vsub.s32 %v2280, %v2282
    %v2284 = vrot.slane %v1883, %v2283
    %vm2285 = vcmask 392512
    %v2286 = vsel %vm2285, %v2284, %v2279
    %v2287 = vadd.s32 %v320, 4294967248
    %v2288 = vlaneseq
    %v2289 = vshrl.u32 %v2288, 7
    %v2290 = vsub.s32 %v2287, %v2289
    %v2291 = vrot.slane %v1886, %v2290
    %vm2292 = vcmask 458112
    %v2293 = vsel %vm2292, %v2291, %v2286
    %v2294 = vadd.s32 %v320, 4294967240
    %v2295 = vlaneseq
    %v2296 = vshrl.u32 %v2295, 7
    %v2297 = vsub.s32 %v2294, %v2296
    %v2298 = vrot.slane %v1889, %v2297
    %vm2299 = vcmask 523712
    %v2300 = vsel %vm2299, %v2298, %v2293
    %v2301 = vadd.s32 %v320, 4294967232
    %v2302 = vlaneseq
    %v2303 = vshrl.u32 %v2302, 7
    %v2304 = vsub.s32 %v2301, %v2303
    %v2305 = vrot.slane %v1892, %v2304
    %vm2306 = vcmask 589312
    %v2307 = vsel %vm2306, %v2305, %v2300
    %v2308 = vadd.s32 %v320, 4294967224
    %v2309 = vlaneseq
    %v2310 = vshrl.u32 %v2309, 7
    %v2311 = vsub.s32 %v2308, %v2310
    %v2312 = vrot.slane %v1895, %v2311
    %vm2313 = vcmask 654912
    %v2314 = vsel %vm2313, %v2312, %v2307
    %v2315 = vadd.s32 %v320, 4294967216
    %v2316 = vlaneseq
    %v2317 = vshrl.u32 %v2316, 7
    %v2318 = vsub.s32 %v2315, %v2317
    %v2319 = vrot.slane %v1898, %v2318
    %vm2320 = vcmask 720512
    %v2321 = vsel %vm2320, %v2319, %v2314
    %v2322 = vadd.s32 %v320, 4294967208
    %v2323 = vlaneseq
    %v2324 = vshrl.u32 %v2323, 7
    %v2325 = vsub.s32 %v2322, %v2324
    %v2326 = vrot.slane %v1901, %v2325
    %vm2327 = vcmask 786112
    %v2328 = vsel %vm2327, %v2326, %v2321
    %v2329 = vadd.s32 %v320, 4294967200
    %v2330 = vlaneseq
    %v2331 = vshrl.u32 %v2330, 7
    %v2332 = vsub.s32 %v2329, %v2331
    %v2333 = vrot.slane %v1904, %v2332
    %vm2334 = vcmask 851712
    %v2335 = vsel %vm2334, %v2333, %v2328
    %v2336 = vadd.s32 %v320, 4294967192
    %v2337 = vlaneseq
    %v2338 = vshrl.u32 %v2337, 7
    %v2339 = vsub.s32 %v2336, %v2338
    %v2340 = vrot.slane %v1907, %v2339
    %vm2341 = vcmask 917312
    %v2342 = vsel %vm2341, %v2340, %v2335
    %v2343 = vadd.s32 %v320, 4294967184
    %v2344 = vlaneseq
    %v2345 = vshrl.u32 %v2344, 7
    %v2346 = vsub.s32 %v2343, %v2345
    %v2347 = vrot.slane %v1910, %v2346
    %vm2348 = vcmask 982912
    %v2349 = vsel %vm2348, %v2347, %v2342
    %v2350 = vadd.s32 %v320, 4294967176
    %v2351 = vlaneseq
    %v2352 = vshrl.u32 %v2351, 7
    %v2353 = vsub.s32 %v2350, %v2352
    %v2354 = vrot.slane %v1913, %v2353
    %vm2355 = vcmask 1048512
    %v2356 = vsel %vm2355, %v2354, %v2349
    %v2357 = vlaneseq
    %v2358 = vshrl.u32 %v2357, 7
    %v2359 = vsub.s32 %v320, %v2358
    %v2360 = vrot.slane %v1916, %v2359
    %v2361 = vlaneseq
    %v2362 = vshrl.u32 %v2361, 7
    %v2363 = vsub.s32 %v325, %v2362
    %v2364 = vrot.slane %v1919, %v2363
    %v2365 = vsel %vm330, %v2364, %v2360
    %v2366 = vlaneseq
    %v2367 = vshrl.u32 %v2366, 7
    %v2368 = vsub.s32 %v2259, %v2367
    %v2369 = vrot.slane %v1922, %v2368
    %v2370 = vsel %vm2264, %v2369, %v2365
    %v2371 = vlaneseq
    %v2372 = vshrl.u32 %v2371, 7
    %v2373 = vsub.s32 %v2266, %v2372
    %v2374 = vrot.slane %v1925, %v2373
    %v2375 = vsel %vm2271, %v2374, %v2370
    %v2376 = vlaneseq
    %v2377 = vshrl.u32 %v2376, 7
    %v2378 = vsub.s32 %v2273, %v2377
    %v2379 = vrot.slane %v1928, %v2378
    %v2380 = vsel %vm2278, %v2379, %v2375
    %v2381 = vlaneseq
    %v2382 = vshrl.u32 %v2381, 7
    %v2383 = vsub.s32 %v2280, %v2382
    %v2384 = vrot.slane %v1931, %v2383
    %v2385 = vsel %vm2285, %v2384, %v2380
    %v2386 = vlaneseq
    %v2387 = vshrl.u32 %v2386, 7
    %v2388 = vsub.s32 %v2287, %v2387
    %v2389 = vrot.slane %v1934, %v2388
    %v2390 = vsel %vm2292, %v2389, %v2385
    %v2391 = vlaneseq
    %v2392 = vshrl.u32 %v2391, 7
    %v2393 = vsub.s32 %v2294, %v2392
    %v2394 = vrot.slane %v1937, %v2393
    %v2395 = vsel %vm2299, %v2394, %v2390
    %v2396 = vlaneseq
    %v2397 = vshrl.u32 %v2396, 7
    %v2398 = vsub.s32 %v2301, %v2397
    %v2399 = vrot.slane %v1940, %v2398
    %v2400 = vsel %vm2306, %v2399, %v2395
    %v2401 = vlaneseq
    %v2402 = vshrl.u32 %v2401, 7
    %v2403 = vsub.s32 %v2308, %v2402
    %v2404 = vrot.slane %v1943, %v2403
    %v2405 = vsel %vm2313, %v2404, %v2400
    %v2406 = vlaneseq
    %v2407 = vshrl.u32 %v2406, 7
    %v2408 = vsub.s32 %v2315, %v2407
    %v2409 = vrot.slane %v1946, %v2408
    %v2410 = vsel %vm2320, %v2409, %v2405
    %v2411 = vlaneseq
    %v2412 = vshrl.u32 %v2411, 7
    %v2413 = vsub.s32 %v2322, %v2412
    %v2414 = vrot.slane %v1949, %v2413
    %v2415 = vsel %vm2327, %v2414, %v2410
    %v2416 = vlaneseq
    %v2417 = vshrl.u32 %v2416, 7
    %v2418 = vsub.s32 %v2329, %v2417
    %v2419 = vrot.slane %v1952, %v2418
    %v2420 = vsel %vm2334, %v2419, %v2415
    %v2421 = vlaneseq
    %v2422 = vshrl.u32 %v2421, 7
    %v2423 = vsub.s32 %v2336, %v2422
    %v2424 = vrot.slane %v1955, %v2423
    %v2425 = vsel %vm2341, %v2424, %v2420
    %v2426 = vlaneseq
    %v2427 = vshrl.u32 %v2426, 7
    %v2428 = vsub.s32 %v2343, %v2427
    %v2429 = vrot.slane %v1958, %v2428
    %v2430 = vsel %vm2348, %v2429, %v2425
    %v2431 = vlaneseq
    %v2432 = vshrl.u32 %v2431, 7
    %v2433 = vsub.s32 %v2350, %v2432
    %v2434 = vrot.slane %v1961, %v2433
    %v2435 = vsel %vm2355, %v2434, %v2430
    %v2436 = vlaneseq
    %v2437 = vshrl.u32 %v2436, 7
    %v2438 = vsub.s32 %v320, %v2437
    %v2439 = vrot.slane %v1964, %v2438
    %v2440 = vlaneseq
    %v2441 = vshrl.u32 %v2440, 7
    %v2442 = vsub.s32 %v325, %v2441
    %v2443 = vrot.slane %v1967, %v2442
    %v2444 = vsel %vm330, %v2443, %v2439
    %v2445 = vlaneseq
    %v2446 = vshrl.u32 %v2445, 7
    %v2447 = vsub.s32 %v2259, %v2446
    %v2448 = vrot.slane %v1970, %v2447
    %v2449 = vsel %vm2264, %v2448, %v2444
    %v2450 = vlaneseq
    %v2451 = vshrl.u32 %v2450, 7
    %v2452 = vsub.s32 %v2266, %v2451
    %v2453 = vrot.slane %v1973, %v2452
    %v2454 = vsel %vm2271, %v2453, %v2449
    %v2455 = vlaneseq
    %v2456 = vshrl.u32 %v2455, 7
    %v2457 = vsub.s32 %v2273, %v2456
    %v2458 = vrot.slane %v1976, %v2457
    %v2459 = vsel %vm2278, %v2458, %v2454
    %v2460 = vlaneseq
    %v2461 = vshrl.u32 %v2460, 7
    %v2462 = vsub.s32 %v2280, %v2461
    %v2463 = vrot.slane %v1979, %v2462
    %v2464 = vsel %vm2285, %v2463, %v2459
    %v2465 = vlaneseq
    %v2466 = vshrl.u32 %v2465, 7
    %v2467 = vsub.s32 %v2287, %v2466
    %v2468 = vrot.slane %v1982, %v2467
    %v2469 = vsel %vm2292, %v2468, %v2464
    %v2470 = vlaneseq
    %v2471 = vshrl.u32 %v2470, 7
    %v2472 = vsub.s32 %v2294, %v2471
    %v2473 = vrot.slane %v1985, %v2472
    %v2474 = vsel %vm2299, %v2473, %v2469
    %v2475 = vlaneseq
    %v2476 = vshrl.u32 %v2475, 7
    %v2477 = vsub.s32 %v2301, %v2476
    %v2478 = vrot.slane %v1988, %v2477
    %v2479 = vsel %vm2306, %v2478, %v2474
    %v2480 = vlaneseq
    %v2481 = vshrl.u32 %v2480, 7
    %v2482 = vsub.s32 %v2308, %v2481
    %v2483 = vrot.slane %v1991, %v2482
    %v2484 = vsel %vm2313, %v2483, %v2479
    %v2485 = vlaneseq
    %v2486 = vshrl.u32 %v2485, 7
    %v2487 = vsub.s32 %v2315, %v2486
    %v2488 = vrot.slane %v1994, %v2487
    %v2489 = vsel %vm2320, %v2488, %v2484
    %v2490 = vlaneseq
    %v2491 = vshrl.u32 %v2490, 7
    %v2492 = vsub.s32 %v2322, %v2491
    %v2493 = vrot.slane %v1997, %v2492
    %v2494 = vsel %vm2327, %v2493, %v2489
    %v2495 = vlaneseq
    %v2496 = vshrl.u32 %v2495, 7
    %v2497 = vsub.s32 %v2329, %v2496
    %v2498 = vrot.slane %v2000, %v2497
    %v2499 = vsel %vm2334, %v2498, %v2494
    %v2500 = vlaneseq
    %v2501 = vshrl.u32 %v2500, 7
    %v2502 = vsub.s32 %v2336, %v2501
    %v2503 = vrot.slane %v2003, %v2502
    %v2504 = vsel %vm2341, %v2503, %v2499
    %v2505 = vlaneseq
    %v2506 = vshrl.u32 %v2505, 7
    %v2507 = vsub.s32 %v2343, %v2506
    %v2508 = vrot.slane %v2006, %v2507
    %v2509 = vsel %vm2348, %v2508, %v2504
    %v2510 = vlaneseq
    %v2511 = vshrl.u32 %v2510, 7
    %v2512 = vsub.s32 %v2350, %v2511
    %v2513 = vrot.slane %v2009, %v2512
    %v2514 = vsel %vm2355, %v2513, %v2509
    %v2515 = vlaneseq
    %v2516 = vshrl.u32 %v2515, 7
    %v2517 = vsub.s32 %v320, %v2516
    %v2518 = vrot.slane %v2012, %v2517
    %v2519 = vlaneseq
    %v2520 = vshrl.u32 %v2519, 7
    %v2521 = vsub.s32 %v325, %v2520
    %v2522 = vrot.slane %v2015, %v2521
    %v2523 = vsel %vm330, %v2522, %v2518
    %v2524 = vlaneseq
    %v2525 = vshrl.u32 %v2524, 7
    %v2526 = vsub.s32 %v2259, %v2525
    %v2527 = vrot.slane %v2018, %v2526
    %v2528 = vsel %vm2264, %v2527, %v2523
    %v2529 = vlaneseq
    %v2530 = vshrl.u32 %v2529, 7
    %v2531 = vsub.s32 %v2266, %v2530
    %v2532 = vrot.slane %v2021, %v2531
    %v2533 = vsel %vm2271, %v2532, %v2528
    %v2534 = vlaneseq
    %v2535 = vshrl.u32 %v2534, 7
    %v2536 = vsub.s32 %v2273, %v2535
    %v2537 = vrot.slane %v2024, %v2536
    %v2538 = vsel %vm2278, %v2537, %v2533
    %v2539 = vlaneseq
    %v2540 = vshrl.u32 %v2539, 7
    %v2541 = vsub.s32 %v2280, %v2540
    %v2542 = vrot.slane %v2027, %v2541
    %v2543 = vsel %vm2285, %v2542, %v2538
    %v2544 = vlaneseq
    %v2545 = vshrl.u32 %v2544, 7
    %v2546 = vsub.s32 %v2287, %v2545
    %v2547 = vrot.slane %v2030, %v2546
    %v2548 = vsel %vm2292, %v2547, %v2543
    %v2549 = vlaneseq
    %v2550 = vshrl.u32 %v2549, 7
    %v2551 = vsub.s32 %v2294, %v2550
    %v2552 = vrot.slane %v2033, %v2551
    %v2553 = vsel %vm2299, %v2552, %v2548
    %v2554 = vlaneseq
    %v2555 = vshrl.u32 %v2554, 7
    %v2556 = vsub.s32 %v2301, %v2555
    %v2557 = vrot.slane %v2036, %v2556
    %v2558 = vsel %vm2306, %v2557, %v2553
    %v2559 = vlaneseq
    %v2560 = vshrl.u32 %v2559, 7
    %v2561 = vsub.s32 %v2308, %v2560
    %v2562 = vrot.slane %v2039, %v2561
    %v2563 = vsel %vm2313, %v2562, %v2558
    %v2564 = vlaneseq
    %v2565 = vshrl.u32 %v2564, 7
    %v2566 = vsub.s32 %v2315, %v2565
    %v2567 = vrot.slane %v2042, %v2566
    %v2568 = vsel %vm2320, %v2567, %v2563
    %v2569 = vlaneseq
    %v2570 = vshrl.u32 %v2569, 7
    %v2571 = vsub.s32 %v2322, %v2570
    %v2572 = vrot.slane %v2045, %v2571
    %v2573 = vsel %vm2327, %v2572, %v2568
    %v2574 = vlaneseq
    %v2575 = vshrl.u32 %v2574, 7
    %v2576 = vsub.s32 %v2329, %v2575
    %v2577 = vrot.slane %v2048, %v2576
    %v2578 = vsel %vm2334, %v2577, %v2573
    %v2579 = vlaneseq
    %v2580 = vshrl.u32 %v2579, 7
    %v2581 = vsub.s32 %v2336, %v2580
    %v2582 = vrot.slane %v2051, %v2581
    %v2583 = vsel %vm2341, %v2582, %v2578
    %v2584 = vlaneseq
    %v2585 = vshrl.u32 %v2584, 7
    %v2586 = vsub.s32 %v2343, %v2585
    %v2587 = vrot.slane %v2054, %v2586
    %v2588 = vsel %vm2348, %v2587, %v2583
    %v2589 = vlaneseq
    %v2590 = vshrl.u32 %v2589, 7
    %v2591 = vsub.s32 %v2350, %v2590
    %v2592 = vrot.slane %v2057, %v2591
    %v2593 = vsel %vm2355, %v2592, %v2588
    %v2594 = vlaneseq
    %v2595 = vshrl.u32 %v2594, 7
    %v2596 = vsub.s32 %v320, %v2595
    %v2597 = vrot.slane %v2060, %v2596
    %v2598 = vlaneseq
    %v2599 = vshrl.u32 %v2598, 7
    %v2600 = vsub.s32 %v325, %v2599
    %v2601 = vrot.slane %v2063, %v2600
    %v2602 = vsel %vm330, %v2601, %v2597
    %v2603 = vlaneseq
    %v2604 = vshrl.u32 %v2603, 7
    %v2605 = vsub.s32 %v2259, %v2604
    %v2606 = vrot.slane %v2066, %v2605
    %v2607 = vsel %vm2264, %v2606, %v2602
    %v2608 = vlaneseq
    %v2609 = vshrl.u32 %v2608, 7
    %v2610 = vsub.s32 %v2266, %v2609
    %v2611 = vrot.slane %v2069, %v2610
    %v2612 = vsel %vm2271, %v2611, %v2607
    %v2613 = vlaneseq
    %v2614 = vshrl.u32 %v2613, 7
    %v2615 = vsub.s32 %v2273, %v2614
    %v2616 = vrot.slane %v2072, %v2615
    %v2617 = vsel %vm2278, %v2616, %v2612
    %v2618 = vlaneseq
    %v2619 = vshrl.u32 %v2618, 7
    %v2620 = vsub.s32 %v2280, %v2619
    %v2621 = vrot.slane %v2075, %v2620
    %v2622 = vsel %vm2285, %v2621, %v2617
    %v2623 = vlaneseq
    %v2624 = vshrl.u32 %v2623, 7
    %v2625 = vsub.s32 %v2287, %v2624
    %v2626 = vrot.slane %v2078, %v2625
    %v2627 = vsel %vm2292, %v2626, %v2622
    %v2628 = vlaneseq
    %v2629 = vshrl.u32 %v2628, 7
    %v2630 = vsub.s32 %v2294, %v2629
    %v2631 = vrot.slane %v2081, %v2630
    %v2632 = vsel %vm2299, %v2631, %v2627
    %v2633 = vlaneseq
    %v2634 = vshrl.u32 %v2633, 7
    %v2635 = vsub.s32 %v2301, %v2634
    %v2636 = vrot.slane %v2084, %v2635
    %v2637 = vsel %vm2306, %v2636, %v2632
    %v2638 = vlaneseq
    %v2639 = vshrl.u32 %v2638, 7
    %v2640 = vsub.s32 %v2308, %v2639
    %v2641 = vrot.slane %v2087, %v2640
    %v2642 = vsel %vm2313, %v2641, %v2637
    %v2643 = vlaneseq
    %v2644 = vshrl.u32 %v2643, 7
    %v2645 = vsub.s32 %v2315, %v2644
    %v2646 = vrot.slane %v2090, %v2645
    %v2647 = vsel %vm2320, %v2646, %v2642
    %v2648 = vlaneseq
    %v2649 = vshrl.u32 %v2648, 7
    %v2650 = vsub.s32 %v2322, %v2649
    %v2651 = vrot.slane %v2093, %v2650
    %v2652 = vsel %vm2327, %v2651, %v2647
    %v2653 = vlaneseq
    %v2654 = vshrl.u32 %v2653, 7
    %v2655 = vsub.s32 %v2329, %v2654
    %v2656 = vrot.slane %v2096, %v2655
    %v2657 = vsel %vm2334, %v2656, %v2652
    %v2658 = vlaneseq
    %v2659 = vshrl.u32 %v2658, 7
    %v2660 = vsub.s32 %v2336, %v2659
    %v2661 = vrot.slane %v2099, %v2660
    %v2662 = vsel %vm2341, %v2661, %v2657
    %v2663 = vlaneseq
    %v2664 = vshrl.u32 %v2663, 7
    %v2665 = vsub.s32 %v2343, %v2664
    %v2666 = vrot.slane %v2102, %v2665
    %v2667 = vsel %vm2348, %v2666, %v2662
    %v2668 = vlaneseq
    %v2669 = vshrl.u32 %v2668, 7
    %v2670 = vsub.s32 %v2350, %v2669
    %v2671 = vrot.slane %v2105, %v2670
    %v2672 = vsel %vm2355, %v2671, %v2667
    %v2673 = vlaneseq
    %v2674 = vshrl.u32 %v2673, 7
    %v2675 = vsub.s32 %v320, %v2674
    %v2676 = vrot.slane %v2108, %v2675
    %v2677 = vlaneseq
    %v2678 = vshrl.u32 %v2677, 7
    %v2679 = vsub.s32 %v325, %v2678
    %v2680 = vrot.slane %v2111, %v2679
    %v2681 = vsel %vm330, %v2680, %v2676
    %v2682 = vlaneseq
    %v2683 = vshrl.u32 %v2682, 7
    %v2684 = vsub.s32 %v2259, %v2683
    %v2685 = vrot.slane %v2114, %v2684
    %v2686 = vsel %vm2264, %v2685, %v2681
    %v2687 = vlaneseq
    %v2688 = vshrl.u32 %v2687, 7
    %v2689 = vsub.s32 %v2266, %v2688
    %v2690 = vrot.slane %v2117, %v2689
    %v2691 = vsel %vm2271, %v2690, %v2686
    %v2692 = vlaneseq
    %v2693 = vshrl.u32 %v2692, 7
    %v2694 = vsub.s32 %v2273, %v2693
    %v2695 = vrot.slane %v2120, %v2694
    %v2696 = vsel %vm2278, %v2695, %v2691
    %v2697 = vlaneseq
    %v2698 = vshrl.u32 %v2697, 7
    %v2699 = vsub.s32 %v2280, %v2698
    %v2700 = vrot.slane %v2123, %v2699
    %v2701 = vsel %vm2285, %v2700, %v2696
    %v2702 = vlaneseq
    %v2703 = vshrl.u32 %v2702, 7
    %v2704 = vsub.s32 %v2287, %v2703
    %v2705 = vrot.slane %v2126, %v2704
    %v2706 = vsel %vm2292, %v2705, %v2701
    %v2707 = vlaneseq
    %v2708 = vshrl.u32 %v2707, 7
    %v2709 = vsub.s32 %v2294, %v2708
    %v2710 = vrot.slane %v2129, %v2709
    %v2711 = vsel %vm2299, %v2710, %v2706
    %v2712 = vlaneseq
    %v2713 = vshrl.u32 %v2712, 7
    %v2714 = vsub.s32 %v2301, %v2713
    %v2715 = vrot.slane %v2132, %v2714
    %v2716 = vsel %vm2306, %v2715, %v2711
    %v2717 = vlaneseq
    %v2718 = vshrl.u32 %v2717, 7
    %v2719 = vsub.s32 %v2308, %v2718
    %v2720 = vrot.slane %v2135, %v2719
    %v2721 = vsel %vm2313, %v2720, %v2716
    %v2722 = vlaneseq
    %v2723 = vshrl.u32 %v2722, 7
    %v2724 = vsub.s32 %v2315, %v2723
    %v2725 = vrot.slane %v2138, %v2724
    %v2726 = vsel %vm2320, %v2725, %v2721
    %v2727 = vlaneseq
    %v2728 = vshrl.u32 %v2727, 7
    %v2729 = vsub.s32 %v2322, %v2728
    %v2730 = vrot.slane %v2141, %v2729
    %v2731 = vsel %vm2327, %v2730, %v2726
    %v2732 = vlaneseq
    %v2733 = vshrl.u32 %v2732, 7
    %v2734 = vsub.s32 %v2329, %v2733
    %v2735 = vrot.slane %v2144, %v2734
    %v2736 = vsel %vm2334, %v2735, %v2731
    %v2737 = vlaneseq
    %v2738 = vshrl.u32 %v2737, 7
    %v2739 = vsub.s32 %v2336, %v2738
    %v2740 = vrot.slane %v2147, %v2739
    %v2741 = vsel %vm2341, %v2740, %v2736
    %v2742 = vlaneseq
    %v2743 = vshrl.u32 %v2742, 7
    %v2744 = vsub.s32 %v2343, %v2743
    %v2745 = vrot.slane %v2150, %v2744
    %v2746 = vsel %vm2348, %v2745, %v2741
    %v2747 = vlaneseq
    %v2748 = vshrl.u32 %v2747, 7
    %v2749 = vsub.s32 %v2350, %v2748
    %v2750 = vrot.slane %v2153, %v2749
    %v2751 = vsel %vm2355, %v2750, %v2746
    %v2752 = vlaneseq
    %v2753 = vshrl.u32 %v2752, 7
    %v2754 = vsub.s32 %v320, %v2753
    %v2755 = vrot.slane %v2156, %v2754
    %v2756 = vlaneseq
    %v2757 = vshrl.u32 %v2756, 7
    %v2758 = vsub.s32 %v325, %v2757
    %v2759 = vrot.slane %v2159, %v2758
    %v2760 = vsel %vm330, %v2759, %v2755
    %v2761 = vlaneseq
    %v2762 = vshrl.u32 %v2761, 7
    %v2763 = vsub.s32 %v2259, %v2762
    %v2764 = vrot.slane %v2162, %v2763
    %v2765 = vsel %vm2264, %v2764, %v2760
    %v2766 = vlaneseq
    %v2767 = vshrl.u32 %v2766, 7
    %v2768 = vsub.s32 %v2266, %v2767
    %v2769 = vrot.slane %v2165, %v2768
    %v2770 = vsel %vm2271, %v2769, %v2765
    %v2771 = vlaneseq
    %v2772 = vshrl.u32 %v2771, 7
    %v2773 = vsub.s32 %v2273, %v2772
    %v2774 = vrot.slane %v2168, %v2773
    %v2775 = vsel %vm2278, %v2774, %v2770
    %v2776 = vlaneseq
    %v2777 = vshrl.u32 %v2776, 7
    %v2778 = vsub.s32 %v2280, %v2777
    %v2779 = vrot.slane %v2171, %v2778
    %v2780 = vsel %vm2285, %v2779, %v2775
    %v2781 = vlaneseq
    %v2782 = vshrl.u32 %v2781, 7
    %v2783 = vsub.s32 %v2287, %v2782
    %v2784 = vrot.slane %v2174, %v2783
    %v2785 = vsel %vm2292, %v2784, %v2780
    %v2786 = vlaneseq
    %v2787 = vshrl.u32 %v2786, 7
    %v2788 = vsub.s32 %v2294, %v2787
    %v2789 = vrot.slane %v2177, %v2788
    %v2790 = vsel %vm2299, %v2789, %v2785
    %v2791 = vlaneseq
    %v2792 = vshrl.u32 %v2791, 7
    %v2793 = vsub.s32 %v2301, %v2792
    %v2794 = vrot.slane %v2180, %v2793
    %v2795 = vsel %vm2306, %v2794, %v2790
    %v2796 = vlaneseq
    %v2797 = vshrl.u32 %v2796, 7
    %v2798 = vsub.s32 %v2308, %v2797
    %v2799 = vrot.slane %v2183, %v2798
    %v2800 = vsel %vm2313, %v2799, %v2795
    %v2801 = vlaneseq
    %v2802 = vshrl.u32 %v2801, 7
    %v2803 = vsub.s32 %v2315, %v2802
    %v2804 = vrot.slane %v2186, %v2803
    %v2805 = vsel %vm2320, %v2804, %v2800
    %v2806 = vlaneseq
    %v2807 = vshrl.u32 %v2806, 7
    %v2808 = vsub.s32 %v2322, %v2807
    %v2809 = vrot.slane %v2189, %v2808
    %v2810 = vsel %vm2327, %v2809, %v2805
    %v2811 = vlaneseq
    %v2812 = vshrl.u32 %v2811, 7
    %v2813 = vsub.s32 %v2329, %v2812
    %v2814 = vrot.slane %v2192, %v2813
    %v2815 = vsel %vm2334, %v2814, %v2810
    %v2816 = vlaneseq
    %v2817 = vshrl.u32 %v2816, 7
    %v2818 = vsub.s32 %v2336, %v2817
    %v2819 = vrot.slane %v2195, %v2818
    %v2820 = vsel %vm2341, %v2819, %v2815
    %v2821 = vlaneseq
    %v2822 = vshrl.u32 %v2821, 7
    %v2823 = vsub.s32 %v2343, %v2822
    %v2824 = vrot.slane %v2198, %v2823
    %v2825 = vsel %vm2348, %v2824, %v2820
    %v2826 = vlaneseq
    %v2827 = vshrl.u32 %v2826, 7
    %v2828 = vsub.s32 %v2350, %v2827
    %v2829 = vrot.slane %v2201, %v2828
    %v2830 = vsel %vm2355, %v2829, %v2825
    %v2831 = vlaneseq
    %v2832 = vshrl.u32 %v2831, 7
    %v2833 = vsub.s32 %v320, %v2832
    %v2834 = vrot.slane %v2204, %v2833
    %v2835 = vlaneseq
    %v2836 = vshrl.u32 %v2835, 7
    %v2837 = vsub.s32 %v325, %v2836
    %v2838 = vrot.slane %v2207, %v2837
    %v2839 = vsel %vm330, %v2838, %v2834
    %v2840 = vlaneseq
    %v2841 = vshrl.u32 %v2840, 7
    %v2842 = vsub.s32 %v2259, %v2841
    %v2843 = vrot.slane %v2210, %v2842
    %v2844 = vsel %vm2264, %v2843, %v2839
    %v2845 = vlaneseq
    %v2846 = vshrl.u32 %v2845, 7
    %v2847 = vsub.s32 %v2266, %v2846
    %v2848 = vrot.slane %v2213, %v2847
    %v2849 = vsel %vm2271, %v2848, %v2844
    %v2850 = vlaneseq
    %v2851 = vshrl.u32 %v2850, 7
    %v2852 = vsub.s32 %v2273, %v2851
    %v2853 = vrot.slane %v2216, %v2852
    %v2854 = vsel %vm2278, %v2853, %v2849
    %v2855 = vlaneseq
    %v2856 = vshrl.u32 %v2855, 7
    %v2857 = vsub.s32 %v2280, %v2856
    %v2858 = vrot.slane %v2219, %v2857
    %v2859 = vsel %vm2285, %v2858, %v2854
    %v2860 = vlaneseq
    %v2861 = vshrl.u32 %v2860, 7
    %v2862 = vsub.s32 %v2287, %v2861
    %v2863 = vrot.slane %v2222, %v2862
    %v2864 = vsel %vm2292, %v2863, %v2859
    %v2865 = vlaneseq
    %v2866 = vshrl.u32 %v2865, 7
    %v2867 = vsub.s32 %v2294, %v2866
    %v2868 = vrot.slane %v2225, %v2867
    %v2869 = vsel %vm2299, %v2868, %v2864
    %v2870 = vlaneseq
    %v2871 = vshrl.u32 %v2870, 7
    %v2872 = vsub.s32 %v2301, %v2871
    %v2873 = vrot.slane %v2228, %v2872
    %v2874 = vsel %vm2306, %v2873, %v2869
    %v2875 = vlaneseq
    %v2876 = vshrl.u32 %v2875, 7
    %v2877 = vsub.s32 %v2308, %v2876
    %v2878 = vrot.slane %v2231, %v2877
    %v2879 = vsel %vm2313, %v2878, %v2874
    %v2880 = vlaneseq
    %v2881 = vshrl.u32 %v2880, 7
    %v2882 = vsub.s32 %v2315, %v2881
    %v2883 = vrot.slane %v2234, %v2882
    %v2884 = vsel %vm2320, %v2883, %v2879
    %v2885 = vlaneseq
    %v2886 = vshrl.u32 %v2885, 7
    %v2887 = vsub.s32 %v2322, %v2886
    %v2888 = vrot.slane %v2237, %v2887
    %v2889 = vsel %vm2327, %v2888, %v2884
    %v2890 = vlaneseq
    %v2891 = vshrl.u32 %v2890, 7
    %v2892 = vsub.s32 %v2329, %v2891
    %v2893 = vrot.slane %v2240, %v2892
    %v2894 = vsel %vm2334, %v2893, %v2889
    %v2895 = vlaneseq
    %v2896 = vshrl.u32 %v2895, 7
    %v2897 = vsub.s32 %v2336, %v2896
    %v2898 = vrot.slane %v2243, %v2897
    %v2899 = vsel %vm2341, %v2898, %v2894
    %v2900 = vlaneseq
    %v2901 = vshrl.u32 %v2900, 7
    %v2902 = vsub.s32 %v2343, %v2901
    %v2903 = vrot.slane %v2246, %v2902
    %v2904 = vsel %vm2348, %v2903, %v2899
    %v2905 = vlaneseq
    %v2906 = vshrl.u32 %v2905, 7
    %v2907 = vsub.s32 %v2350, %v2906
    %v2908 = vrot.slane %v2249, %v2907
    %v2909 = vsel %vm2355, %v2908, %v2904
    %v2910 = vsel %vm539, %v2435, %v2356
    %v2911 = vsel %vm541, %v2514, %v2910
    %vm2912 = vcmask 1043459
    %v2913 = vsel %vm2912, %v2593, %v2911
    %vm2914 = vcmask 1044484
    %v2915 = vsel %vm2914, %v2672, %v2913
    %vm2916 = vcmask 1045509
    %v2917 = vsel %vm2916, %v2751, %v2915
    %vm2918 = vcmask 1046534
    %v2919 = vsel %vm2918, %v2830, %v2917
    %vm2920 = vcmask 1047559
    %v2921 = vsel %vm2920, %v2909, %v2919
    %v2922 = vpack.c.b16 %v2921, %v2921
    %v2940 = vunpack.c.l.b16 %v1651
    %v2941 = vunpack.c.l.b16 %v1652
    %v2942 = vunpack.c.l.b16 %v1653
    %v2943 = vunpack.c.l.b16 %v1654
    %v2944 = vunpack.c.l.b16 %v1655
    %v2945 = vunpack.c.l.b16 %v1656
    %v2946 = vunpack.c.l.b16 %v1657
    %v2947 = vunpack.c.l.b16 %v1658
    %v2948 = vunpack.c.l.b16 %v1659
    %v2949 = vunpack.c.l.b16 %v1660
    %v2950 = vunpack.c.l.b16 %v1661
    %v2951 = vunpack.c.l.b16 %v1662
    %v2952 = vunpack.c.l.b16 %v1663
    %v2953 = vunpack.c.l.b16 %v1664
    %v2954 = vunpack.c.l.b16 %v1665
    %v2955 = vunpack.c.l.b16 %v1666
    %v2956 = vpack.c.b16 %v2941, %v2940
    %v2957 = vpack.c.b16 %v2943, %v2942
    %v2958 = vpack.c.b16 %v2945, %v2944
    %v2959 = vpack.c.b16 %v2947, %v2946
    %v2960 = vpack.c.b16 %v2949, %v2948
    %v2961 = vpack.c.b16 %v2951, %v2950
    %v2962 = vpack.c.b16 %v2953, %v2952
    %v2963 = vpack.c.b16 %v2955, %v2954
    %2972 = vmatprep.subr.bf16.mxu0 0
    %2973 = vmatpush1.bf16.msra.mxu0 %v2956
    %2974 = vmatprep.subr.bf16.mxu0 0
    %2975 = vmatpush1.bf16.msra.mxu0 %v2957
    %2976 = vmatprep.subr.bf16.mxu0 0
    %2977 = vmatpush1.bf16.msra.mxu0 %v2958
    %2978 = vmatprep.subr.bf16.mxu0 0
    %2979 = vmatpush1.bf16.msra.mxu0 %v2959
    %2980 = vmatprep.subr.bf16.mxu0 0
    %2981 = vmatpush1.bf16.msra.mxu0 %v2960
    %2982 = vmatprep.subr.bf16.mxu0 0
    %2983 = vmatpush1.bf16.msra.mxu0 %v2961
    %2984 = vmatprep.subr.bf16.mxu0 0
    %2985 = vmatpush1.bf16.msra.mxu0 %v2962
    %2986 = vmatprep.subr.bf16.mxu0 0
    %2987 = vmatpush1.bf16.msra.mxu0 %v2963
    %2988 = vmatprep.subr.bf16.mxu0 0
    %2989 = vmatpush1.bf16.msra.mxu0 0
    %2990 = vmatprep.subr.bf16.mxu0 0
    %2991 = vmatpush1.bf16.msra.mxu0 0
    %2992 = vmatprep.subr.bf16.mxu0 0
    %2993 = vmatpush1.bf16.msra.mxu0 0
    %2994 = vmatprep.subr.bf16.mxu0 0
    %2995 = vmatpush1.bf16.msra.mxu0 0
    %2996 = vmatprep.subr.bf16.mxu0 0
    %2997 = vmatpush1.bf16.msra.mxu0 0
    %2998 = vmatprep.subr.bf16.mxu0 0
    %2999 = vmatpush1.bf16.msra.mxu0 0
    %3000 = vmatprep.subr.bf16.mxu0 0
    %3001 = vmatpush1.bf16.msra.mxu0 0
    %3002 = vmatprep.subr.bf16.mxu0 0
    %3003 = vmatpush1.bf16.msra.mxu0 0
    %3004 = vmatprep.mubr.bf16.mxu0 0
    %3005 = vmatmul.mubr.bf16.gmra.mrb[0].mxu0 %v2922
    %v3006 = vpop.f32.mrb[0].mxu0
    %v3007 = vadd.f32 %v1672, %v3006
    %v3008 = vpop.f32.mrb[0].mxu0
    %v3009 = vpop.f32.mrb[0].mxu0
    %v3010 = vpop.f32.mrb[0].mxu0
    %3011 = vdwg.mxu0
    %v3012 = vxor.u32 %v3007, 2147483648
    %v3013 = vmul.f32 %v3012, 1.442695
    %v3014 = vpow.pop %v3013
    %v3015 = vadd.f32 %v3014, 1.0
    %v3016 = vrcp.pop %v3015
    %v3017 = vmul.f32 1.0, %v3016
    %v3018 = vpack.c.bf16 %v3017, %v3017
    %v3019 = vld [vmem:[#allocation8] sm:$0xf]
    %v3020 = vld [vmem:[#allocation8 + $0x4] sm:$0xf]
    %v3021 = vld [vmem:[#allocation8 + $0x8] sm:$0xf]
    %v3022 = vld [vmem:[#allocation8 + $0xc] sm:$0xf]
    %v3023 = vld [vmem:[#allocation8 + $0x10] sm:$0xf]
    %v3024 = vld [vmem:[#allocation8 + $0x14] sm:$0xf]
    %v3025 = vld [vmem:[#allocation8 + $0x18] sm:$0xf]
    %v3026 = vld [vmem:[#allocation8 + $0x1c] sm:$0xf]
    %v3027 = vld [vmem:[#allocation8 + $0x20] sm:$0xf]
    %v3028 = vld [vmem:[#allocation8 + $0x24] sm:$0xf]
    %v3029 = vld [vmem:[#allocation8 + $0x28] sm:$0xf]
    %v3030 = vld [vmem:[#allocation8 + $0x2c] sm:$0xf]
    %v3031 = vld [vmem:[#allocation8 + $0x30] sm:$0xf]
    %v3032 = vld [vmem:[#allocation8 + $0x34] sm:$0xf]
    %v3033 = vld [vmem:[#allocation8 + $0x38] sm:$0xf]
    %v3034 = vld [vmem:[#allocation8 + $0x3c] sm:$0xf]
    %v3035 = vld [vmem:[%s5] sm:$0x1]
    %v3037 = vlaneseq
    %v3038 = vshrl.u32 %v3037, 7
    %v3039 = vsub.s32 0, %v3038
    %v3040 = vrot.slane %v3035, %v3039
    %v3058 = vunpack.c.l.b16 %v3019
    %v3059 = vunpack.c.l.b16 %v3020
    %v3060 = vunpack.c.l.b16 %v3021
    %v3061 = vunpack.c.l.b16 %v3022
    %v3062 = vunpack.c.l.b16 %v3023
    %v3063 = vunpack.c.l.b16 %v3024
    %v3064 = vunpack.c.l.b16 %v3025
    %v3065 = vunpack.c.l.b16 %v3026
    %v3066 = vunpack.c.l.b16 %v3027
    %v3067 = vunpack.c.l.b16 %v3028
    %v3068 = vunpack.c.l.b16 %v3029
    %v3069 = vunpack.c.l.b16 %v3030
    %v3070 = vunpack.c.l.b16 %v3031
    %v3071 = vunpack.c.l.b16 %v3032
    %v3072 = vunpack.c.l.b16 %v3033
    %v3073 = vunpack.c.l.b16 %v3034
    %v3074 = vpack.c.b16 %v3059, %v3058
    %v3075 = vpack.c.b16 %v3061, %v3060
    %v3076 = vpack.c.b16 %v3063, %v3062
    %v3077 = vpack.c.b16 %v3065, %v3064
    %v3078 = vpack.c.b16 %v3067, %v3066
    %v3079 = vpack.c.b16 %v3069, %v3068
    %v3080 = vpack.c.b16 %v3071, %v3070
    %v3081 = vpack.c.b16 %v3073, %v3072
    %3090 = vmatprep.subr.bf16.mxu0 0
    %3091 = vmatpush1.bf16.msra.mxu0 %v3074
    %3092 = vmatprep.subr.bf16.mxu0 0
    %3093 = vmatpush1.bf16.msra.mxu0 %v3075
    %3094 = vmatprep.subr.bf16.mxu0 0
    %3095 = vmatpush1.bf16.msra.mxu0 %v3076
    %3096 = vmatprep.subr.bf16.mxu0 0
    %3097 = vmatpush1.bf16.msra.mxu0 %v3077
    %3098 = vmatprep.subr.bf16.mxu0 0
    %3099 = vmatpush1.bf16.msra.mxu0 %v3078
    %3100 = vmatprep.subr.bf16.mxu0 0
    %3101 = vmatpush1.bf16.msra.mxu0 %v3079
    %3102 = vmatprep.subr.bf16.mxu0 0
    %3103 = vmatpush1.bf16.msra.mxu0 %v3080
    %3104 = vmatprep.subr.bf16.mxu0 0
    %3105 = vmatpush1.bf16.msra.mxu0 %v3081
    %3106 = vmatprep.subr.bf16.mxu0 0
    %3107 = vmatpush1.bf16.msra.mxu0 0
    %3108 = vmatprep.subr.bf16.mxu0 0
    %3109 = vmatpush1.bf16.msra.mxu0 0
    %3110 = vmatprep.subr.bf16.mxu0 0
    %3111 = vmatpush1.bf16.msra.mxu0 0
    %3112 = vmatprep.subr.bf16.mxu0 0
    %3113 = vmatpush1.bf16.msra.mxu0 0
    %3114 = vmatprep.subr.bf16.mxu0 0
    %3115 = vmatpush1.bf16.msra.mxu0 0
    %3116 = vmatprep.subr.bf16.mxu0 0
    %3117 = vmatpush1.bf16.msra.mxu0 0
    %3118 = vmatprep.subr.bf16.mxu0 0
    %3119 = vmatpush1.bf16.msra.mxu0 0
    %3120 = vmatprep.subr.bf16.mxu0 0
    %3121 = vmatpush1.bf16.msra.mxu0 0
    %3122 = vmatprep.mubr.bf16.mxu0 0
    %3123 = vmatmul.mubr.bf16.gmra.mrb[0].mxu0 %v3018
    %v3124 = vpop.f32.mrb[0].mxu0
    %v3125 = vadd.f32 %v3040, %v3124
    %v3126 = vpop.f32.mrb[0].mxu0
    %v3127 = vpop.f32.mrb[0].mxu0
    %v3128 = vpop.f32.mrb[0].mxu0
    %3129 = vdwg.mxu0
    %v3130 = vxor.u32 %v3125, 2147483648
    %v3131 = vmul.f32 %v3130, 1.442695
    %v3132 = vpow.pop %v3131
    %v3133 = vadd.f32 %v3132, 1.0
    %v3134 = vrcp.pop %v3133
    %v3135 = vmul.f32 1.0, %v3134
    %3136 = vst [vmem:[#allocation10] sm:$0xff] %v3135
    // Predicated region
    $region42: #{tpu_custom_call.1} parent=1 // pred_check
      _
    $region43: #{tpu_custom_call.1} parent=1 // pred_check_branch
      %3138 = sbr.rel (0) target = $region45
    $region44: #{tpu_custom_call.1} parent=1 // pred_region
      %s3140 = ssub.s32 128, 128
      %3141 = vsyncadd [#allocation4], %s3140
      %s3143 = sshll.u32 [#allocation10], 4
      %s3144 = int_to_ptr.vmem [resolvable:$true] %s3143
      %3146 = dma.vmem_to_hbm [thread:$0]  %s3144, 128, %s6, [#allocation4]
    $region45: #{tpu_custom_call.1} parent=1 // pred_fallthru
      _
    // Predicated region
    $region46: #{tpu_custom_call.1} parent=1 // pred_check
      _
    $region47: #{tpu_custom_call.1} parent=1 // pred_check_branch
      %3148 = sbr.rel (0) target = $region49
    $region48: #{tpu_custom_call.1} parent=1 // pred_region
      %3149 = dma.done [#allocation4], 128
    $region49: #{tpu_custom_call.1} parent=1 // pred_fallthru
      _
    %3150 = vsyncpa [#allocation3], 1
    %3151 = vsyncpa [#allocation6], 1
    %3152 = vsyncpa [#allocation9], 1
    %3153 = vsyncpa [#allocation4], 1

</llo_original>
